<compile_context>
chip_gen: v6e
topology: v6e:2x2x1
jax: 0.10.0
libtpu: 0.0.40
codegen_flags: <defaults>
</compile_context>

<pallas_src>
import functools

import jax
import jax.numpy as jnp
from jax import lax
from jax.experimental import pallas as pl
from jax.experimental.pallas import tpu as pltpu

GROWTH = 32
LANE = 128


def _round_up(x, m):
    return ((x + m - 1) // m) * m


def _pick_vmem_limit():
    # v5e/v6e: 128 MiB physical VMEM -> 64 MiB scoped budget; v7x: 64 MiB
    # physical -> stay at 32 MiB.  Worst-case per-call usage below is ~22 MiB.
    try:
        cap = int(pltpu.get_tpu_info().vmem_capacity_bytes)
    except Exception:
        cap = 0
    return 64 * 1024 * 1024 if cap >= 96 * 1024 * 1024 else 32 * 1024 * 1024


VMEM_LIMIT = _pick_vmem_limit()


# ----------------------------------------------------------------------------
# Kernel 1: fused (f32 add + ReLU) -> bf16 matmul -> (+shift [+ReLU])
# ----------------------------------------------------------------------------
def _mm_kernel(*refs, has_pre, has_post, post_relu):
    idx = 0
    x_ref = refs[idx]; idx += 1
    w_ref = refs[idx]; idx += 1
    pre_ref = post_ref = None
    if has_pre:
        pre_ref = refs[idx]; idx += 1
    if has_post:
        post_ref = refs[idx]; idx += 1
    o_ref = refs[idx]

    x = x_ref[...]                                   # (tm, K) bf16
    if has_pre:
        # folded BN: relu(s*x+t) == s*relu(x + t/s) for s>0; s is folded into
        # the weight rows.  The shift stays f32 and the add is done in f32.
        x = jnp.maximum(x.astype(jnp.float32) + pre_ref[...], 0.0)
        x = x.astype(jnp.bfloat16)
    y = jnp.dot(x, w_ref[...], preferred_element_type=jnp.float32)   # MXU
    if has_post:
        y = y + post_ref[...]                        # folded BN shift / bias
    if post_relu:
        y = jnp.maximum(y, 0.0)
    o_ref[...] = y.astype(o_ref.dtype)


@functools.lru_cache(maxsize=None)
def _build_matmul(m_pad, k, n, tm, has_pre, has_post, post_relu, out_dtype):
    kernel = functools.partial(_mm_kernel, has_pre=has_pre, has_post=has_post,
                               post_relu=post_relu)
    in_specs = [
        pl.BlockSpec((tm, k), lambda i: (i, 0)),     # activation tile
        pl.BlockSpec((k, n), lambda i: (0, 0)),      # weights, VMEM-resident
    ]
    if has_pre:
        in_specs.append(pl.BlockSpec((1, k), lambda i: (0, 0)))
    if has_post:
        in_specs.append(pl.BlockSpec((1, n), lambda i: (0, 0)))
    return pl.pallas_call(
        kernel,
        out_shape=jax.ShapeDtypeStruct((m_pad, n), out_dtype),
        grid_spec=pltpu.PrefetchScalarGridSpec(
            num_scalar_prefetch=0,
            grid=(m_pad // tm,),
            in_specs=in_specs,
            out_specs=pl.BlockSpec((tm, n), lambda i: (i, 0)),
        ),
        compiler_params=pltpu.CompilerParams(
            dimension_semantics=("parallel",),
            vmem_limit_bytes=VMEM_LIMIT,
        ),
    )


def _choose_tiling(m):
    """M tile: prefer an exact divisor (no pad copy) that is a multiple of 16
    (bf16 sublane packing), as large as possible but <= 512 and giving >= 2
    grid steps; fall back to 8-aligned divisors, then padding."""
    for align in (16, 8):
        best = 0
        tm = align
        while tm <= 512:
            if m % tm == 0 and m // tm >= 2:
                best = tm
            tm += align
        if best:
            return best, m
    if m <= 512:
        tm = _round_up(m, 8)
        return tm, tm
    return 512, _round_up(m, 512)


def fused_matmul(x, w, *, pre_shift=None, post_shift=None, post_relu=False,
                 out_dtype=jnp.bfloat16):
    """out = [relu](([relu](x + pre_shift)) @ w + post_shift); bf16 datapath."""
    m, k = x.shape
    kp, n = w.shape
    tm, m_pad = _choose_tiling(m)
    xp = x.astype(jnp.bfloat16)
    if (m_pad, kp) != (m, k):
        xp = jnp.pad(xp, ((0, m_pad - m), (0, kp - k)))
    args = [xp, w]
    if pre_shift is not None:
        args.append(pre_shift)
    if post_shift is not None:
        args.append(post_shift)
    fn = _build_matmul(m_pad, kp, n, tm, pre_shift is not None,
                       post_shift is not None, bool(post_relu), out_dtype)
    out = fn(*args)
    return out[:m] if m_pad != m else out


# ----------------------------------------------------------------------------
# Kernel 2: fused dense layer (BN1+ReLU -> 1x1 -> BN2+ReLU -> 3x3 same conv)
# ----------------------------------------------------------------------------
def _dense_layer_kernel(feat_ref, w1_ref, pre_ref, post_ref, w3_ref, out_ref,
                        y1_ref, cols_ref, *, P, wp, h, w, guard):
    # feat_ref : (1, P, C)  padded-flattened features (P = (h+2)*(w+2)), bf16
    # w1_ref   : (C, 128)   1x1 weights with BN1/BN2 scales folded in, bf16
    # pre_ref  : (1, C) f32 BN1 shift/scale ; post_ref: (1, 128) f32 BN2 shift
    # w3_ref   : (9*128, 128) K-concat 3x3 taps (out channels padded 32->128)
    # out_ref  : (1, P, 128) new features (only [:32] and the interior are used)

    # ---- 1x1 conv with folded BN1 (f32 add + ReLU) and BN2 (add + ReLU) ----
    x = feat_ref[0]                                               # (P, C) bf16
    xr = jnp.maximum(x.astype(jnp.float32) + pre_ref[...], 0.0)
    y1 = jnp.dot(xr.astype(jnp.bfloat16), w1_ref[...],
                 preferred_element_type=jnp.float32)              # (P, 128)
    y1 = jnp.maximum(y1 + post_ref[...], 0.0).astype(jnp.bfloat16)

    # ---- zero the spatial pad ring (emulates the 3x3 conv's zero padding) ---
    idx = lax.broadcasted_iota(jnp.int32, (P, LANE), 0).astype(jnp.float32)
    row = jnp.floor((idx + 0.5) * (1.0 / wp))
    col = idx - row * wp
    interior = ((row > 0.5) & (row < h + 0.5) &
                (col > 0.5) & (col < w + 0.5))
    y1 = jnp.where(interior, y1, 0)

    # ---- stage y1 with zero guards so the 9 taps become plain row shifts ----
    y1_ref[pl.ds(guard, P), :] = y1
    zeros = jnp.zeros((guard, LANE), jnp.bfloat16)
    y1_ref[pl.ds(0, guard), :] = zeros
    y1_ref[pl.ds(guard + P, guard), :] = zeros

    # ---- 3x3 conv: copy each shifted view once (K-concat), then ONE matmul
    #      with K = 9*128 so tap accumulation happens inside the MXU. ---------
    for ky in range(3):
        for kx in range(3):
            t = ky * 3 + kx
            off = guard + (ky - 1) * wp + (kx - 1)        # static row shift
            cols_ref[:, t * LANE:(t + 1) * LANE] = y1_ref[pl.ds(off, P), :]
    out = jnp.dot(cols_ref[...], w3_ref[...],
                  preferred_element_type=jnp.float32)             # (P, 128)
    out_ref[0] = out.astype(out_ref.dtype)


@functools.lru_cache(maxsize=None)
def _build_dense_layer(n_img, P, c_in, hp, wp, h, w, guard):
    kernel = functools.partial(_dense_layer_kernel, P=P, wp=wp, h=h, w=w,
                               guard=guard)
    return pl.pallas_call(
        kernel,
        out_shape=jax.ShapeDtypeStruct((n_img, P, LANE), jnp.bfloat16),
        grid_spec=pltpu.PrefetchScalarGridSpec(
            num_scalar_prefetch=0,
            grid=(n_img,),
            in_specs=[
                pl.BlockSpec((1, P, c_in), lambda i: (i, 0, 0)),   # features
                pl.BlockSpec((c_in, LANE), lambda i: (0, 0)),      # w1 (folded)
                pl.BlockSpec((1, c_in), lambda i: (0, 0)),         # pre shift
                pl.BlockSpec((1, LANE), lambda i: (0, 0)),         # post shift
                pl.BlockSpec((9 * LANE, LANE), lambda i: (0, 0)),  # 3x3 taps
            ],
            out_specs=pl.BlockSpec((1, P, LANE), lambda i: (i, 0, 0)),
            scratch_shapes=[
                pltpu.VMEM((guard + P + guard, LANE), jnp.bfloat16),  # y1
                pltpu.VMEM((P, 9 * LANE), jnp.bfloat16),              # K-concat
            ],
        ),
        compiler_params=pltpu.CompilerParams(
            dimension_semantics=("parallel",),
            vmem_limit_bytes=VMEM_LIMIT,
        ),
    )


def dense_block_fwd(x, layers):
    """Run one dense block.  The feature map lives in a padded-flattened
    (n, (h+2)*(w+2), C) bf16 layout for the whole block; the pad ring is
    discarded at the block exit (garbage there is masked inside the kernel)."""
    n, h, w, c0 = x.shape
    hp, wp = h + 2, w + 2
    P = hp * wp
    guard = _round_up(wp + 1, 8)
    feat = jnp.pad(x.astype(jnp.bfloat16),
                   ((0, 0), (1, 1), (1, 1), (0, 0))).reshape(n, P, c0)
    for lp in layers:
        c = feat.shape[-1]
        fn = _build_dense_layer(n, P, c, hp, wp, h, w, guard)
        new = fn(feat, lp['w1'], lp['pre1'], lp['post1'], lp['w3'])
        # TODO(synk): replace with an aliased in-place channel-slice write.
        feat = jnp.concatenate([feat, new[..., :GROWTH]], axis=-1)
    c_out = feat.shape[-1]
    return feat.reshape(n, hp, wp, c_out)[:, 1:h + 1, 1:w + 1, :]


# ----------------------------------------------------------------------------
# Glue: stem im2col + pooling (jnp/lax; fuses under the end-to-end jit)
# ----------------------------------------------------------------------------
def im2col(x, kh, kw, stride, pad, k_pad_to=None):
    n, h, w, c = x.shape
    xp = jnp.pad(x, ((0, 0), (pad, pad), (pad, pad), (0, 0)))
    ho = (h + 2 * pad - kh) // stride + 1
    wo = (w + 2 * pad - kw) // stride + 1
    patches = []
    for ky in range(kh):
        for kx in range(kw):
            patches.append(
                xp[:, ky:ky + stride * ho:stride, kx:kx + stride * wo:stride, :])
    if k_pad_to is not None and k_pad_to > kh * kw * c:
        patches.append(jnp.zeros((n, ho, wo, k_pad_to - kh * kw * c), x.dtype))
    cols = jnp.concatenate(patches, axis=-1)          # (ky, kx, c) ordering
    return cols.reshape(n * ho * wo, -1), ho, wo


def maxpool_3x3_s2_p1(x):
    return lax.reduce_window(
        x, jnp.asarray(-jnp.inf, x.dtype), lax.max,
        window_dimensions=(1, 3, 3, 1), window_strides=(1, 2, 2, 1),
        padding=((0, 0), (1, 1), (1, 1), (0, 0)))


def avgpool_2x2(x):
    n, h, w, c = x.shape
    y = x.astype(jnp.float32).reshape(n, h // 2, 2, w // 2, 2, c).mean(axis=(2, 4))
    return y.astype(jnp.bfloat16)


# ----------------------------------------------------------------------------
# Deterministic synthetic parameters (PyTorch-shaped), then one-time prep
# ----------------------------------------------------------------------------
class KeyGen:
    def __init__(self, seed):
        self.key = jax.random.PRNGKey(seed)

    def __call__(self):
        self.key, k = jax.random.split(self.key)
        return k


def init_bn(kg, c, eps=1e-5):
    gamma = jax.random.uniform(kg(), (c,), jnp.float32, 0.8, 1.2)   # > 0
    beta = jax.random.uniform(kg(), (c,), jnp.float32, -0.1, 0.1)
    mean = jax.random.uniform(kg(), (c,), jnp.float32, -0.1, 0.1)
    var = jax.random.uniform(kg(), (c,), jnp.float32, 0.5, 1.5)
    scale = gamma / jnp.sqrt(var + eps)               # inference-mode fold
    shift = beta - mean * scale
    return scale, shift


def init_conv(kg, kh, kw, cin, cout):
    fan_in = cin * kh * kw
    bound = (6.0 / fan_in) ** 0.5
    w = jax.random.uniform(kg(), (kh, kw, cin, cout), jnp.float32, -bound, bound)
    return w.reshape(kh * kw * cin, cout)             # matmul layout (K, N)


def init_linear(kg, cin, cout):
    bound = (6.0 / cin) ** 0.5
    return jax.random.uniform(kg(), (cin, cout), jnp.float32, -bound, bound)


BLOCK_CONFIG = {121: [6, 12, 24, 16], 169: [6, 12, 32, 32],
                201: [6, 12, 48, 32], 264: [6, 12, 64, 48]}


def init_densenet(config, num_classes, seed=42):
    kg = KeyGen(seed)
    k = GROWTH
    p = {}
    p['bn1_scale'], p['bn1_shift'] = init_bn(kg, 3)
    p['conv1_w'] = init_conv(kg, 7, 7, 3, 2 * k)      # (147, 64)
    k0 = 2 * k
    blocks = []
    for i, num_layers in enumerate(BLOCK_CONFIG[config]):
        layers = []
        for j in range(num_layers):
            cin = k0 + j * k
            s1, b1 = init_bn(kg, cin)
            s2, b2 = init_bn(kg, 4 * k)
            layers.append({
                'bn1_scale': s1, 'bn1_shift': b1,
                'w1': init_conv(kg, 1, 1, cin, 4 * k),
                'b1c': jnp.zeros((4 * k,), jnp.float32),
                'bn2_scale': s2, 'bn2_shift': b2,
                'w3': init_conv(kg, 3, 3, 4 * k, k),    # (9*128, 32) K-concat
            })
        k0 += k * num_layers
        blk = {'layers': layers}
        if i != len(BLOCK_CONFIG[config]) - 1:
            ts, tb = init_bn(kg, k0)
            blk['transition'] = {
                'bn_scale': ts, 'bn_shift': tb,
                'w': init_conv(kg, 1, 1, k0, k0 // 2),
            }
            k0 //= 2
        blocks.append(blk)
    p['blocks'] = blocks
    p['bn2_scale'], p['bn2_shift'] = init_bn(kg, k0)
    p['fc_w'] = init_linear(kg, k0, num_classes)
    p['fc_b'] = jnp.zeros((num_classes,), jnp.float32)
    return p


def prepare_params(p):
    """One-time prep: fold BN scales into conv weights (valid: gamma > 0 by
    construction), keep pre/post shifts in f32, pad lane-sparse output dims to
    128, and cast all matmul operands to bf16.  Conv biases are zero (the
    module's init_weights zeroes them) and are therefore folded/omitted."""
    q = {'bn1_scale': p['bn1_scale'], 'bn1_shift': p['bn1_shift']}
    w1 = p['conv1_w']                                           # (147, 64)
    kp = _round_up(w1.shape[0], 8)
    q['conv1_w'] = jnp.pad(
        w1, ((0, kp - w1.shape[0]), (0, LANE - w1.shape[1]))).astype(jnp.bfloat16)

    blocks = []
    for blk in p['blocks']:
        layers = []
        for lp in blk['layers']:
            cin = lp['w1'].shape[0]
            s1, t1 = lp['bn1_scale'], lp['bn1_shift']
            s2, t2 = lp['bn2_scale'], lp['bn2_shift']
            w1f = lp['w1'] * s1[:, None] * s2[None, :]          # fold bn1 & bn2
            pre = (t1 / s1).reshape(1, cin).astype(jnp.float32)  # requires s1>0
            post = (t2 + lp['b1c'] * s2).reshape(1, 4 * GROWTH).astype(jnp.float32)
            w3k = jnp.pad(lp['w3'],                             # (1152, 32->128)
                          ((0, 0), (0, LANE - GROWTH))).astype(jnp.bfloat16)
            layers.append({'w1': w1f.astype(jnp.bfloat16), 'pre1': pre,
                           'post1': post, 'w3': w3k})
        nb = {'layers': layers}
        if 'transition' in blk:
            tp = blk['transition']
            s, t = tp['bn_scale'], tp['bn_shift']
            nb['transition'] = {
                'w': (tp['w'] * s[:, None]).astype(jnp.bfloat16),
                'pre': (t / s).reshape(1, -1).astype(jnp.float32),
            }
        blocks.append(nb)
    q['blocks'] = blocks
    q['bn2_scale'], q['bn2_shift'] = p['bn2_scale'], p['bn2_shift']
    ncls = p['fc_w'].shape[1]
    npad = _round_up(ncls, LANE)
    q['fc_w'] = jnp.pad(p['fc_w'], ((0, 0), (0, npad - ncls))).astype(jnp.bfloat16)
    q['fc_b'] = jnp.pad(p['fc_b'], (0, npad - ncls)).reshape(1, npad).astype(jnp.float32)
    return q


# ----------------------------------------------------------------------------
# Forward pass
# ----------------------------------------------------------------------------
def transition_fwd(x, tp):
    n, h, w, c = x.shape
    y = fused_matmul(x.reshape(n * h * w, c), tp['w'], pre_shift=tp['pre'])
    return avgpool_2x2(y.reshape(n, h, w, -1))


def densenet_forward(x_nchw, q, *, num_classes):
    # The module applies BN(3ch)+ReLU to the INPUT, then conv_1 -> maxpool
    # (no BN/ReLU between conv_1 and the pool) - matched exactly here.
    x = jnp.transpose(x_nchw, (0, 2, 3, 1)).astype(jnp.float32)
    x = jnp.maximum(x * q['bn1_scale'] + q['bn1_shift'], 0.0).astype(jnp.bfloat16)
    n = x.shape[0]
    cols, ho, wo = im2col(x, 7, 7, 2, 3, k_pad_to=q['conv1_w'].shape[0])
    y = fused_matmul(cols, q['conv1_w'])
    y = y[:, :2 * GROWTH].reshape(n, ho, wo, 2 * GROWTH)
    y = maxpool_3x3_s2_p1(y)

    for blk in q['blocks']:
        y = dense_block_fwd(y, blk['layers'])
        if 'transition' in blk:
            y = transition_fwd(y, blk['transition'])

    # Head: BN + ReLU, global 7x7 avg-pool, Linear (Pallas matmul, padded N).
    y = jnp.maximum(y.astype(jnp.float32) * q['bn2_scale'] + q['bn2_shift'], 0.0)
    feat = y.mean(axis=(1, 2))
    logits = fused_matmul(feat.astype(jnp.bfloat16), q['fc_w'],
                          post_shift=q['fc_b'], out_dtype=jnp.float32)
    return logits[:, :num_classes]


# ----------------------------------------------------------------------------
def _self_test_dense_layer():
    """Fused dense-layer kernel vs. a pure-f32 reference on a tiny case."""
    kg = KeyGen(123)
    n, h, w, cin = 1, 8, 8, 64
    x = jax.random.normal(kg(), (n, h, w, cin), jnp.float32)
    s1, t1 = init_bn(kg, cin)
    s2, t2 = init_bn(kg, 4 * GROWTH)
    w1 = jax.random.normal(kg(), (cin, 4 * GROWTH), jnp.float32) * 0.1
    w3 = jax.random.normal(kg(), (3, 3, 4 * GROWTH, GROWTH), jnp.float32) * 0.05

    # Reference: bn1 -> relu -> 1x1 -> bn2 -> relu -> 3x3 (zero bias), f32.
    a = jnp.maximum(x * s1 + t1, 0.0)
    b = jnp.einsum('nhwc,cd->nhwd', a, w1)
    c = jnp.maximum(b * s2 + t2, 0.0)
    ref = lax.conv_general_dilated(
        c, w3, window_strides=(1, 1), padding='SAME',
        dimension_numbers=('NHWC', 'HWIO', 'NHWC'))

    lp = {'w1': (w1 * s1[:, None] * s2[None, :]).astype(jnp.bfloat16),
          'pre1': (t1 / s1).reshape(1, cin).astype(jnp.float32),
          'post1': t2.reshape(1, 4 * GROWTH).astype(jnp.float32),
          'w3': jnp.pad(w3.reshape(9 * 4 * GROWTH, GROWTH),
                        ((0, 0), (0, LANE - GROWTH))).astype(jnp.bfloat16)}
    got = dense_block_fwd(x.astype(jnp.bfloat16), [lp])
    got = got[..., cin:].astype(jnp.float32)          # the 32 new channels
    err = float(jnp.max(jnp.abs(got - ref)))
    scale = float(jnp.max(jnp.abs(ref))) + 1e-6
    assert err / scale < 3e-2, f"dense-layer self-test failed: {err} vs {scale}"


if __name__ == "__main__":
    num_classes = 10
    _self_test_dense_layer()

    raw = init_densenet(config=121, num_classes=num_classes, seed=42)
    params = prepare_params(raw)

    # DenseNet's final 7x7 global avg-pool implies a 224x224 input (N,3,H,W).
    x = jax.random.normal(jax.random.PRNGKey(0), (2, 3, 224, 224), jnp.float32)

    forward = jax.jit(functools.partial(densenet_forward, num_classes=num_classes))
    logits = jax.block_until_ready(forward(x, params))

    assert logits.shape == (2, num_classes)
    assert bool(jnp.all(jnp.isfinite(logits)))
    print("KERNEL_OK")
</pallas_src>

<mosaic_0001>
module attributes {stable_mosaic.version = 11 : i64} {
  func.func @_dense_layer_kernel(%arg0: i32, %arg1: memref<1x100x64xbf16, #tpu.memory_space<vmem>>, %arg2: memref<64x128xbf16, #tpu.memory_space<vmem>>, %arg3: memref<1x64xf32, #tpu.memory_space<vmem>>, %arg4: memref<1x128xf32, #tpu.memory_space<vmem>>, %arg5: memref<1152x128xbf16, #tpu.memory_space<vmem>>, %arg6: memref<1x100x128xbf16, #tpu.memory_space<vmem>>, %arg7: memref<132x128xbf16, #tpu.memory_space<vmem>>, %arg8: memref<100x1152xbf16, #tpu.memory_space<vmem>>) attributes {dimension_semantics = [#tpu.dimension_semantics<parallel>], iteration_bounds = array<i64: 1>, scalar_prefetch = 0 : i64, scratch_operands = 2 : i64, tpu.core_type = #tpu.core_type<tc>, window_params = [{transform_indices = @transform_0, window_bounds = array<i64: 1, 100, 64>}, {pipeline_mode = #tpu.pipeline_mode<synchronous>, transform_indices = @transform_1, window_bounds = array<i64: 64, 128>}, {pipeline_mode = #tpu.pipeline_mode<synchronous>, transform_indices = @transform_2, window_bounds = array<i64: 1, 64>}, {pipeline_mode = #tpu.pipeline_mode<synchronous>, transform_indices = @transform_3, window_bounds = array<i64: 1, 128>}, {pipeline_mode = #tpu.pipeline_mode<synchronous>, transform_indices = @transform_4, window_bounds = array<i64: 1152, 128>}, {transform_indices = @transform_5, window_bounds = array<i64: 1, 100, 128>}]} {
    %c0 = arith.constant 0 : index
    %c0_0 = arith.constant 0 : index
    %c0_1 = arith.constant 0 : index
    %0 = vector.load %arg1[%c0, %c0_0, %c0_1] : memref<1x100x64xbf16, #tpu.memory_space<vmem>>, vector<1x100x64xbf16>
    %1 = vector.shape_cast %0 : vector<1x100x64xbf16> to vector<100x64xbf16>
    %2 = arith.extf %1 : vector<100x64xbf16> to vector<100x64xf32>
    %c0_2 = arith.constant 0 : index
    %c0_3 = arith.constant 0 : index
    %3 = vector.load %arg3[%c0_2, %c0_3] : memref<1x64xf32, #tpu.memory_space<vmem>>, vector<1x64xf32>
    %4 = vector.broadcast %3 : vector<1x64xf32> to vector<100x64xf32>
    %5 = arith.addf %2, %4 : vector<100x64xf32>
    %cst = arith.constant 0.000000e+00 : f32
    %6 = vector.broadcast %cst : f32 to vector<100x64xf32>
    %7 = arith.maximumf %5, %6 : vector<100x64xf32>
    %8 = arith.truncf %7 : vector<100x64xf32> to vector<100x64xbf16>
    %c0_4 = arith.constant 0 : index
    %c0_5 = arith.constant 0 : index
    %9 = vector.load %arg2[%c0_4, %c0_5] : memref<64x128xbf16, #tpu.memory_space<vmem>>, vector<64x128xbf16>
    %cst_6 = arith.constant dense<0.000000e+00> : vector<100x128xf32>
    %10 = tpu.matmul %8, %9, %cst_6 {dimension_numbers = #tpu.dot_dimension_numbers<[1], [0], [0], [1], [0, 0, 1, 1], [], []>} : vector<100x64xbf16>, vector<64x128xbf16>, vector<100x128xf32> -> vector<100x128xf32>
    %c0_7 = arith.constant 0 : index
    %c0_8 = arith.constant 0 : index
    %11 = vector.load %arg4[%c0_7, %c0_8] : memref<1x128xf32, #tpu.memory_space<vmem>>, vector<1x128xf32>
    %12 = vector.broadcast %11 : vector<1x128xf32> to vector<100x128xf32>
    %13 = arith.addf %10, %12 : vector<100x128xf32>
    %cst_9 = arith.constant 0.000000e+00 : f32
    %14 = vector.broadcast %cst_9 : f32 to vector<100x128xf32>
    %15 = arith.maximumf %13, %14 : vector<100x128xf32>
    %16 = arith.truncf %15 : vector<100x128xf32> to vector<100x128xbf16>
    %17 = tpu.iota {dimensions = array<i32: 0>} : vector<100x128xi32>
    %18 = arith.sitofp %17 : vector<100x128xi32> to vector<100x128xf32>
    %cst_10 = arith.constant 5.000000e-01 : f32
    %19 = vector.broadcast %cst_10 : f32 to vector<100x128xf32>
    %20 = arith.addf %18, %19 : vector<100x128xf32>
    %cst_11 = arith.constant 1.000000e-01 : f32
    %21 = vector.broadcast %cst_11 : f32 to vector<100x128xf32>
    %22 = arith.mulf %20, %21 : vector<100x128xf32>
    %23 = math.floor %22 : vector<100x128xf32>
    %cst_12 = arith.constant 1.000000e+01 : f32
    %24 = vector.broadcast %cst_12 : f32 to vector<100x128xf32>
    %25 = arith.mulf %23, %24 : vector<100x128xf32>
    %26 = arith.subf %18, %25 : vector<100x128xf32>
    %cst_13 = arith.constant 5.000000e-01 : f32
    %27 = vector.broadcast %cst_13 : f32 to vector<100x128xf32>
    %28 = arith.cmpf ogt, %23, %27 : vector<100x128xf32>
    %cst_14 = arith.constant 8.500000e+00 : f32
    %29 = vector.broadcast %cst_14 : f32 to vector<100x128xf32>
    %30 = arith.cmpf olt, %23, %29 : vector<100x128xf32>
    %31 = arith.andi %28, %30 : vector<100x128xi1>
    %cst_15 = arith.constant 5.000000e-01 : f32
    %32 = vector.broadcast %cst_15 : f32 to vector<100x128xf32>
    %33 = arith.cmpf ogt, %26, %32 : vector<100x128xf32>
    %34 = arith.andi %31, %33 : vector<100x128xi1>
    %cst_16 = arith.constant 8.500000e+00 : f32
    %35 = vector.broadcast %cst_16 : f32 to vector<100x128xf32>
    %36 = arith.cmpf olt, %26, %35 : vector<100x128xf32>
    %37 = arith.andi %34, %36 : vector<100x128xi1>
    %c0_i32 = arith.constant 0 : i32
    %38 = arith.sitofp %c0_i32 : i32 to bf16
    %39 = vector.broadcast %38 : bf16 to vector<100x128xbf16>
    %40 = arith.select %37, %16, %39 : vector<100x128xi1>, vector<100x128xbf16>
    %c16 = arith.constant 16 : index
    %c0_17 = arith.constant 0 : index
    %41 = vector.load %arg7[%c16, %c0_17] : memref<132x128xbf16, #tpu.memory_space<vmem>>, vector<100x128xbf16>
    tpu.vector_store %arg7[%c16, %c0_17], %40 {strides = array<i32>} : memref<132x128xbf16, #tpu.memory_space<vmem>>, vector<100x128xbf16>,
    %cst_18 = arith.constant 0.000000e+00 : bf16
    %42 = vector.broadcast %cst_18 : bf16 to vector<16x128xbf16>
    %c0_19 = arith.constant 0 : index
    %c0_20 = arith.constant 0 : index
    %43 = vector.load %arg7[%c0_19, %c0_20] : memref<132x128xbf16, #tpu.memory_space<vmem>>, vector<16x128xbf16>
    tpu.vector_store %arg7[%c0_19, %c0_20], %42 {strides = array<i32>} : memref<132x128xbf16, #tpu.memory_space<vmem>>, vector<16x128xbf16>,
    %c116 = arith.constant 116 : index
    %c0_21 = arith.constant 0 : index
    %44 = vector.load %arg7[%c116, %c0_21] : memref<132x128xbf16, #tpu.memory_space<vmem>>, vector<16x128xbf16>
    tpu.vector_store %arg7[%c116, %c0_21], %42 {strides = array<i32>} : memref<132x128xbf16, #tpu.memory_space<vmem>>, vector<16x128xbf16>,
    %c5 = arith.constant 5 : index
    %c0_22 = arith.constant 0 : index
    %45 = vector.load %arg7[%c5, %c0_22] : memref<132x128xbf16, #tpu.memory_space<vmem>>, vector<100x128xbf16>
    %c0_23 = arith.constant 0 : index
    %c0_24 = arith.constant 0 : index
    %46 = vector.load %arg8[%c0_23, %c0_24] : memref<100x1152xbf16, #tpu.memory_space<vmem>>, vector<100x128xbf16>
    tpu.vector_store %arg8[%c0_23, %c0_24], %45 {strides = array<i32>} : memref<100x1152xbf16, #tpu.memory_space<vmem>>, vector<100x128xbf16>,
    %c6 = arith.constant 6 : index
    %c0_25 = arith.constant 0 : index
    %47 = vector.load %arg7[%c6, %c0_25] : memref<132x128xbf16, #tpu.memory_space<vmem>>, vector<100x128xbf16>
    %c0_26 = arith.constant 0 : index
    %c128 = arith.constant 128 : index
    %48 = vector.load %arg8[%c0_26, %c128] : memref<100x1152xbf16, #tpu.memory_space<vmem>>, vector<100x128xbf16>
    tpu.vector_store %arg8[%c0_26, %c128], %47 {strides = array<i32>} : memref<100x1152xbf16, #tpu.memory_space<vmem>>, vector<100x128xbf16>,
    %c7 = arith.constant 7 : index
    %c0_27 = arith.constant 0 : index
    %49 = vector.load %arg7[%c7, %c0_27] : memref<132x128xbf16, #tpu.memory_space<vmem>>, vector<100x128xbf16>
    %c0_28 = arith.constant 0 : index
    %c256 = arith.constant 256 : index
    %50 = vector.load %arg8[%c0_28, %c256] : memref<100x1152xbf16, #tpu.memory_space<vmem>>, vector<100x128xbf16>
    tpu.vector_store %arg8[%c0_28, %c256], %49 {strides = array<i32>} : memref<100x1152xbf16, #tpu.memory_space<vmem>>, vector<100x128xbf16>,
    %c15 = arith.constant 15 : index
    %c0_29 = arith.constant 0 : index
    %51 = vector.load %arg7[%c15, %c0_29] : memref<132x128xbf16, #tpu.memory_space<vmem>>, vector<100x128xbf16>
    %c0_30 = arith.constant 0 : index
    %c384 = arith.constant 384 : index
    %52 = vector.load %arg8[%c0_30, %c384] : memref<100x1152xbf16, #tpu.memory_space<vmem>>, vector<100x128xbf16>
    tpu.vector_store %arg8[%c0_30, %c384], %51 {strides = array<i32>} : memref<100x1152xbf16, #tpu.memory_space<vmem>>, vector<100x128xbf16>,
    %c16_31 = arith.constant 16 : index
    %c0_32 = arith.constant 0 : index
    %53 = vector.load %arg7[%c16_31, %c0_32] : memref<132x128xbf16, #tpu.memory_space<vmem>>, vector<100x128xbf16>
    %c0_33 = arith.constant 0 : index
    %c512 = arith.constant 512 : index
    %54 = vector.load %arg8[%c0_33, %c512] : memref<100x1152xbf16, #tpu.memory_space<vmem>>, vector<100x128xbf16>
    tpu.vector_store %arg8[%c0_33, %c512], %53 {strides = array<i32>} : memref<100x1152xbf16, #tpu.memory_space<vmem>>, vector<100x128xbf16>,
    %c17 = arith.constant 17 : index
    %c0_34 = arith.constant 0 : index
    %55 = vector.load %arg7[%c17, %c0_34] : memref<132x128xbf16, #tpu.memory_space<vmem>>, vector<100x128xbf16>
    %c0_35 = arith.constant 0 : index
    %c640 = arith.constant 640 : index
    %56 = vector.load %arg8[%c0_35, %c640] : memref<100x1152xbf16, #tpu.memory_space<vmem>>, vector<100x128xbf16>
    tpu.vector_store %arg8[%c0_35, %c640], %55 {strides = array<i32>} : memref<100x1152xbf16, #tpu.memory_space<vmem>>, vector<100x128xbf16>,
    %c25 = arith.constant 25 : index
    %c0_36 = arith.constant 0 : index
    %57 = vector.load %arg7[%c25, %c0_36] : memref<132x128xbf16, #tpu.memory_space<vmem>>, vector<100x128xbf16>
    %c0_37 = arith.constant 0 : index
    %c768 = arith.constant 768 : index
    %58 = vector.load %arg8[%c0_37, %c768] : memref<100x1152xbf16, #tpu.memory_space<vmem>>, vector<100x128xbf16>
    tpu.vector_store %arg8[%c0_37, %c768], %57 {strides = array<i32>} : memref<100x1152xbf16, #tpu.memory_space<vmem>>, vector<100x128xbf16>,
    %c26 = arith.constant 26 : index
    %c0_38 = arith.constant 0 : index
    %59 = vector.load %arg7[%c26, %c0_38] : memref<132x128xbf16, #tpu.memory_space<vmem>>, vector<100x128xbf16>
    %c0_39 = arith.constant 0 : index
    %c896 = arith.constant 896 : index
    %60 = vector.load %arg8[%c0_39, %c896] : memref<100x1152xbf16, #tpu.memory_space<vmem>>, vector<100x128xbf16>
    tpu.vector_store %arg8[%c0_39, %c896], %59 {strides = array<i32>} : memref<100x1152xbf16, #tpu.memory_space<vmem>>, vector<100x128xbf16>,
    %c27 = arith.constant 27 : index
    %c0_40 = arith.constant 0 : index
    %61 = vector.load %arg7[%c27, %c0_40] : memref<132x128xbf16, #tpu.memory_space<vmem>>, vector<100x128xbf16>
    %c0_41 = arith.constant 0 : index
    %c1024 = arith.constant 1024 : index
    %62 = vector.load %arg8[%c0_41, %c1024] : memref<100x1152xbf16, #tpu.memory_space<vmem>>, vector<100x128xbf16>
    tpu.vector_store %arg8[%c0_41, %c1024], %61 {strides = array<i32>} : memref<100x1152xbf16, #tpu.memory_space<vmem>>, vector<100x128xbf16>,
    %c0_42 = arith.constant 0 : index
    %c0_43 = arith.constant 0 : index
    %63 = vector.load %arg8[%c0_42, %c0_43] : memref<100x1152xbf16, #tpu.memory_space<vmem>>, vector<100x1152xbf16>
    %c0_44 = arith.constant 0 : index
    %c0_45 = arith.constant 0 : index
    %64 = vector.load %arg5[%c0_44, %c0_45] : memref<1152x128xbf16, #tpu.memory_space<vmem>>, vector<1152x128xbf16>
    %cst_46 = arith.constant dense<0.000000e+00> : vector<100x128xf32>
    %65 = tpu.matmul %63, %64, %cst_46 {dimension_numbers = #tpu.dot_dimension_numbers<[1], [0], [0], [1], [0, 0, 1, 1], [], []>} : vector<100x1152xbf16>, vector<1152x128xbf16>, vector<100x128xf32> -> vector<100x128xf32>
    %66 = arith.truncf %65 : vector<100x128xf32> to vector<100x128xbf16>
    %c0_47 = arith.constant 0 : index
    %c0_48 = arith.constant 0 : index
    %c0_49 = arith.constant 0 : index
    %67 = vector.load %arg6[%c0_47, %c0_48, %c0_49] : memref<1x100x128xbf16, #tpu.memory_space<vmem>>, vector<1x100x128xbf16>
    %68 = vector.shape_cast %67 : vector<1x100x128xbf16> to vector<100x128xbf16>
    %69 = vector.shape_cast %66 : vector<100x128xbf16> to vector<1x100x128xbf16>
    tpu.vector_store %arg6[%c0_47, %c0_48, %c0_49], %69 {strides = array<i32>} : memref<1x100x128xbf16, #tpu.memory_space<vmem>>, vector<1x100x128xbf16>,
    return
  }
  func.func @transform_0(%arg0: i32) -> (i32, i32, i32) {
    %c0_i32 = arith.constant 0 : i32
    %c0_i32_0 = arith.constant 0 : i32
    %c0_i32_1 = arith.constant 0 : i32
    return %arg0, %c0_i32, %c0_i32_0 : i32, i32, i32
  }
  func.func @transform_1(%arg0: i32) -> (i32, i32) {
    %c0_i32 = arith.constant 0 : i32
    %c0_i32_0 = arith.constant 0 : i32
    %c0_i32_1 = arith.constant 0 : i32
    return %c0_i32, %c0_i32_0 : i32, i32
  }
  func.func @transform_2(%arg0: i32) -> (i32, i32) {
    %c0_i32 = arith.constant 0 : i32
    %c0_i32_0 = arith.constant 0 : i32
    %c0_i32_1 = arith.constant 0 : i32
    return %c0_i32, %c0_i32_0 : i32, i32
  }
  func.func @transform_3(%arg0: i32) -> (i32, i32) {
    %c0_i32 = arith.constant 0 : i32
    %c0_i32_0 = arith.constant 0 : i32
    %c0_i32_1 = arith.constant 0 : i32
    return %c0_i32, %c0_i32_0 : i32, i32
  }
  func.func @transform_4(%arg0: i32) -> (i32, i32) {
    %c0_i32 = arith.constant 0 : i32
    %c0_i32_0 = arith.constant 0 : i32
    %c0_i32_1 = arith.constant 0 : i32
    return %c0_i32, %c0_i32_0 : i32, i32
  }
  func.func @transform_5(%arg0: i32) -> (i32, i32, i32) {
    %c0_i32 = arith.constant 0 : i32
    %c0_i32_0 = arith.constant 0 : i32
    %c0_i32_1 = arith.constant 0 : i32
    return %arg0, %c0_i32, %c0_i32_0 : i32, i32, i32
  }
}

</mosaic_0001>

<llo_original>
// kernel: tpu_custom_call.1
$region0: #{tpu_custom_call.1}
  #allocation0 [shape = 'u32[]', space=smem, size = 0x4, offset = 0x4, fixed_abs, tag = 'smem constant byte address 0x4 - core index']
  #allocation1 [shape = 'u32[144,128]{1,0:T(1,128)}', space=vmem, size = 0x12000, scoped, tag = 'internal scratch']
  #allocation2 [shape = 'bf16[132,128]{1,0:T(8,128)(2,1)}', space=vmem, size = 0x8800, scoped, tag = 'scratch operand']
  #allocation3 [shape = 'bf16[100,1152]{1,0:T(8,128)(2,1)}', space=vmem, size = 0x3a800, scoped, tag = 'scratch operand']
  %s0 = inlined_call_operand.vmem [shape: bf16[1,100,64], index: 0, kind: input, shape index: {}]
  %s1 = inlined_call_operand.vmem [shape: bf16[64,128], index: 1, kind: input, shape index: {}]
  %s2 = inlined_call_operand.vmem [shape: f32[1,64], index: 2, kind: input, shape index: {}]
  %s3 = inlined_call_operand.vmem [shape: f32[1,128], index: 3, kind: input, shape index: {}]
  %s4 = inlined_call_operand.hbm [shape: bf16[1152,128], index: 4, kind: input, shape index: {}]
  %s5 = inlined_call_operand.hbm [shape: bf16[1,100,128], index: 5, kind: output, shape index: {}]
  %s6 = sld [smem:[#allocation0]]
  $region34: #{tpu_custom_call.1} parent=0
    _
  %s8 = ssub.s32 1, %s6
  %s9 = scalar_select 0, %s8, %s6
  $region1: #{tpu_custom_call.1} parent=0
    #allocation4 [shape = 'u8[294912]{0}', space=vmem, size = 0x48000, scoped, tag = 'input window, operand 4, single buffered']
    #allocation5 [shape = 's32[1]{0}', space=sflag, size = 0x4, scoped, tag = 'scoped memory for tpu_custom_call.1']
    #allocation6 [shape = 's32[1]{0}', space=sflag, size = 0x4, scoped, tag = 'scoped memory for tpu_custom_call.1']
    #allocation7 [shape = 'u8[26624]{0}', space=vmem, size = 0x6800, scoped, tag = 'output window, operand 0, single buffered']
    %10 = vsyncpa [#allocation5], 0
    %11 = vsyncpa [#allocation6], 0
    // Predicated region
    $region2: #{tpu_custom_call.1} parent=1 // pred_check
      _
    $region3: #{tpu_custom_call.1} parent=1 // pred_check_branch
      %13 = sbr.rel (0) target = $region5
    $region4: #{tpu_custom_call.1} parent=1 // pred_region
      _
    $region5: #{tpu_custom_call.1} parent=1 // pred_fallthru
      _
    // Predicated region
    $region6: #{tpu_custom_call.1} parent=1 // pred_check
      _
    $region7: #{tpu_custom_call.1} parent=1 // pred_check_branch
      %15 = sbr.rel (0) target = $region9
    $region8: #{tpu_custom_call.1} parent=1 // pred_region
      _
    $region9: #{tpu_custom_call.1} parent=1 // pred_fallthru
      _
    // Predicated region
    $region10: #{tpu_custom_call.1} parent=1 // pred_check
      _
    $region11: #{tpu_custom_call.1} parent=1 // pred_check_branch
      %17 = sbr.rel (0) target = $region13
    $region12: #{tpu_custom_call.1} parent=1 // pred_region
      _
    $region13: #{tpu_custom_call.1} parent=1 // pred_fallthru
      _
    // Predicated region
    $region14: #{tpu_custom_call.1} parent=1 // pred_check
      _
    $region15: #{tpu_custom_call.1} parent=1 // pred_check_branch
      %19 = sbr.rel (0) target = $region17
    $region16: #{tpu_custom_call.1} parent=1 // pred_region
      _
    $region17: #{tpu_custom_call.1} parent=1 // pred_fallthru
      _
    // Predicated region
    $region18: #{tpu_custom_call.1} parent=1 // pred_check
      _
    $region19: #{tpu_custom_call.1} parent=1 // pred_check_branch
      %21 = sbr.rel (0) target = $region21
    $region20: #{tpu_custom_call.1} parent=1 // pred_region
      %s23 = ssub.s32 9216, 9216
      %24 = vsyncadd [#allocation5], %s23
      %s25 = sshll.u32 [#allocation4], 4
      %s26 = int_to_ptr.vmem [resolvable:$true] %s25
      %31 = dma.hbm_to_vmem [thread:$0]  %s4, 9216, %s26, [#allocation5], 64, 64, 4
    $region21: #{tpu_custom_call.1} parent=1 // pred_fallthru
      _
    // Predicated region
    $region22: #{tpu_custom_call.1} parent=1 // pred_check
      _
    $region23: #{tpu_custom_call.1} parent=1 // pred_check_branch
      %33 = sbr.rel (0) target = $region25
    $region24: #{tpu_custom_call.1} parent=1 // pred_region
      %34 = dma.done [#allocation5], 9216
    $region25: #{tpu_custom_call.1} parent=1 // pred_fallthru
      _
    %v38 = vld [vmem:[%s0] sm:$0xf]
    %v39 = vld [vmem:[%s0 + $0x4] sm:$0xf]
    %v40 = vld [vmem:[%s0 + $0x8] sm:$0xf]
    %v41 = vld [vmem:[%s0 + $0xc] sm:$0xf]
    %v42 = vld [vmem:[%s0 + $0x10] sm:$0xf]
    %v43 = vld [vmem:[%s0 + $0x14] sm:$0xf]
    %v44 = vld [vmem:[%s0 + $0x18] sm:$0xf]
    %v45 = vld [vmem:[%s0 + $0x1c] sm:$0xf]
    %v46 = vld [vmem:[%s0 + $0x20] sm:$0xf]
    %v47 = vld [vmem:[%s0 + $0x24] sm:$0xf]
    %v48 = vld [vmem:[%s0 + $0x28] sm:$0xf]
    %v49 = vld [vmem:[%s0 + $0x2c] sm:$0xf]
    %v50 = vld [vmem:[%s0 + $0x30] sm:$0x3]
    %v51 = vunpack.c.l.bf16 %v38
    %v52 = vunpack.c.l.bf16 %v39
    %v53 = vunpack.c.l.bf16 %v40
    %v54 = vunpack.c.l.bf16 %v41
    %v55 = vunpack.c.l.bf16 %v42
    %v56 = vunpack.c.l.bf16 %v43
    %v57 = vunpack.c.l.bf16 %v44
    %v58 = vunpack.c.l.bf16 %v45
    %v59 = vunpack.c.l.bf16 %v46
    %v60 = vunpack.c.l.bf16 %v47
    %v61 = vunpack.c.l.bf16 %v48
    %v62 = vunpack.c.l.bf16 %v49
    %v63 = vunpack.c.l.bf16 %v50
    %v64 = vld [vmem:[%s2] sm:$0x1]
    %v66 = vlaneseq
    %v67 = vshrl.u32 %v66, 7
    %v68 = vsub.s32 0, %v67
    %v69 = vrot.slane %v64, %v68
    %v71 = vadd.f32 %v51, %v69
    %v72 = vadd.f32 %v52, %v69
    %v73 = vadd.f32 %v53, %v69
    %v74 = vadd.f32 %v54, %v69
    %v75 = vadd.f32 %v55, %v69
    %v76 = vadd.f32 %v56, %v69
    %v77 = vadd.f32 %v57, %v69
    %v78 = vadd.f32 %v58, %v69
    %v79 = vadd.f32 %v59, %v69
    %v80 = vadd.f32 %v60, %v69
    %v81 = vadd.f32 %v61, %v69
    %v82 = vadd.f32 %v62, %v69
    %v83 = vadd.f32 %v63, %v69
    %v84 = vmax.f32 %v71, 0.0
    %v85 = vmax.f32 %v72, 0.0
    %v86 = vmax.f32 %v73, 0.0
    %v87 = vmax.f32 %v74, 0.0
    %v88 = vmax.f32 %v75, 0.0
    %v89 = vmax.f32 %v76, 0.0
    %v90 = vmax.f32 %v77, 0.0
    %v91 = vmax.f32 %v78, 0.0
    %v92 = vmax.f32 %v79, 0.0
    %v93 = vmax.f32 %v80, 0.0
    %v94 = vmax.f32 %v81, 0.0
    %v95 = vmax.f32 %v82, 0.0
    %v96 = vmax.f32 %v83, 0.0
    %v97 = vpack.c.bf16 %v85, %v84
    %v98 = vpack.c.bf16 %v87, %v86
    %v99 = vpack.c.bf16 %v89, %v88
    %v100 = vpack.c.bf16 %v91, %v90
    %v101 = vpack.c.bf16 %v93, %v92
    %v102 = vpack.c.bf16 %v95, %v94
    %v103 = vpack.c.bf16 %v96, %v96
    %v104 = vld [vmem:[%s1] sm:$0xf]
    %v105 = vld [vmem:[%s1 + $0x4] sm:$0xf]
    %v106 = vld [vmem:[%s1 + $0x8] sm:$0xf]
    %v107 = vld [vmem:[%s1 + $0xc] sm:$0xf]
    %v108 = vld [vmem:[%s1 + $0x10] sm:$0xf]
    %v109 = vld [vmem:[%s1 + $0x14] sm:$0xf]
    %v110 = vld [vmem:[%s1 + $0x18] sm:$0xf]
    %v111 = vld [vmem:[%s1 + $0x1c] sm:$0xf]
    %v112 = vld [vmem:[%s3] sm:$0x1]
    %v114 = vlaneseq
    %v115 = vshrl.u32 %v114, 7
    %v116 = vsub.s32 0, %v115
    %v117 = vrot.slane %v112, %v116
    %v127 = vunpack.c.l.b16 %v104
    %v128 = vunpack.c.l.b16 %v105
    %v129 = vunpack.c.l.b16 %v106
    %v130 = vunpack.c.l.b16 %v107
    %v131 = vunpack.c.l.b16 %v108
    %v132 = vunpack.c.l.b16 %v109
    %v133 = vunpack.c.l.b16 %v110
    %v134 = vunpack.c.l.b16 %v111
    %v135 = vpack.c.b16 %v128, %v127
    %v136 = vpack.c.b16 %v130, %v129
    %v137 = vpack.c.b16 %v132, %v131
    %v138 = vpack.c.b16 %v134, %v133
    %vm143 = vcmask 523264
    %v145 = vsel %vm143, %v97, 0
    %v148 = vsel %vm143, %v98, 0
    %v151 = vsel %vm143, %v99, 0
    %v154 = vsel %vm143, %v100, 0
    %v157 = vsel %vm143, %v101, 0
    %v160 = vsel %vm143, %v102, 0
    %v163 = vsel %vm143, %v103, 0
    %165 = vmatprep.subr.bf16.mxu0 0
    %166 = vmatpush1.bf16.msra.mxu0 0
    %167 = vmatprep.subr.bf16.mxu0 0
    %168 = vmatpush1.bf16.msra.mxu0 0
    %169 = vmatprep.subr.bf16.mxu0 0
    %170 = vmatpush1.bf16.msra.mxu0 0
    %171 = vmatprep.subr.bf16.mxu0 0
    %172 = vmatpush1.bf16.msra.mxu0 0
    %173 = vmatprep.subr.bf16.mxu0 0
    %174 = vmatpush1.bf16.msra.mxu0 %v138
    %175 = vmatprep.subr.bf16.mxu0 0
    %176 = vmatpush1.bf16.msra.mxu0 %v137
    %177 = vmatprep.subr.bf16.mxu0 0
    %178 = vmatpush1.bf16.msra.mxu0 %v136
    %179 = vmatprep.subr.bf16.mxu0 0
    %180 = vmatpush1.bf16.msra.mxu0 %v135
    %181 = vmatprep.subr.bf16.mxu0 0
    %182 = vmatpush2.bf16.msra.mxu0 0
    %183 = vmatprep.subr.bf16.mxu0 0
    %184 = vmatpush2.bf16.msra.mxu0 0
    %185 = vmatprep.subr.bf16.mxu0 0
    %186 = vmatpush2.bf16.msra.mxu0 0
    %187 = vmatprep.subr.bf16.mxu0 0
    %188 = vmatpush2.bf16.msra.mxu0 0
    %189 = vmatprep.subr.bf16.mxu0 0
    %190 = vmatpush2.bf16.msra.mxu0 0
    %191 = vmatprep.subr.bf16.mxu0 0
    %192 = vmatpush2.bf16.msra.mxu0 0
    %193 = vmatprep.subr.bf16.mxu0 0
    %194 = vmatpush2.bf16.msra.mxu0 0
    %195 = vmatprep.subr.bf16.mxu0 0
    %196 = vmatpush2.bf16.msra.mxu0 0
    %197 = vmatprep.mubr.bf16.mxu0 0
    %198 = vmatmul.mubr.bf16.gmra.mxu0 %v145
    %v199 = vpop.f32.mrf.mxu0
    %v200 = vadd.f32 %v117, %v199
    %v201 = vpop.f32.mrf.mxu0
    %v202 = vpop.f32.mrf.mxu0
    %v203 = vadd.f32 %v117, %v202
    %v204 = vpop.f32.mrf.mxu0
    %205 = vmatprep.mubr.bf16.mxu0 0
    %206 = vmatmul.mubr.bf16.gmra.mxu0 %v148
    %v207 = vpop.f32.mrf.mxu0
    %v208 = vadd.f32 %v117, %v207
    %v209 = vpop.f32.mrf.mxu0
    %v210 = vpop.f32.mrf.mxu0
    %v211 = vadd.f32 %v117, %v210
    %v212 = vpop.f32.mrf.mxu0
    %213 = vmatprep.mubr.bf16.mxu0 0
    %214 = vmatmul.mubr.bf16.gmra.mxu0 %v151
    %v215 = vpop.f32.mrf.mxu0
    %v216 = vadd.f32 %v117, %v215
    %v217 = vpop.f32.mrf.mxu0
    %v218 = vpop.f32.mrf.mxu0
    %v219 = vadd.f32 %v117, %v218
    %v220 = vpop.f32.mrf.mxu0
    %221 = vmatprep.mubr.bf16.mxu0 0
    %222 = vmatmul.mubr.bf16.gmra.mxu0 %v154
    %v223 = vpop.f32.mrf.mxu0
    %v224 = vadd.f32 %v117, %v223
    %v225 = vpop.f32.mrf.mxu0
    %v226 = vpop.f32.mrf.mxu0
    %v227 = vadd.f32 %v117, %v226
    %v228 = vpop.f32.mrf.mxu0
    %229 = vmatprep.mubr.bf16.mxu0 0
    %230 = vmatmul.mubr.bf16.gmra.mxu0 %v157
    %v231 = vpop.f32.mrf.mxu0
    %v232 = vadd.f32 %v117, %v231
    %v233 = vpop.f32.mrf.mxu0
    %v234 = vpop.f32.mrf.mxu0
    %v235 = vadd.f32 %v117, %v234
    %v236 = vpop.f32.mrf.mxu0
    %237 = vmatprep.mubr.bf16.mxu0 0
    %238 = vmatmul.mubr.bf16.gmra.mxu0 %v160
    %v239 = vpop.f32.mrf.mxu0
    %v240 = vadd.f32 %v117, %v239
    %v241 = vpop.f32.mrf.mxu0
    %v242 = vpop.f32.mrf.mxu0
    %v243 = vadd.f32 %v117, %v242
    %v244 = vpop.f32.mrf.mxu0
    %245 = vmatprep.mubr.bf16.mxu0 0
    %246 = vmatmul.mubr.bf16.gmra.mxu0 %v163
    %v247 = vpop.f32.mrf.mxu0
    %v248 = vadd.f32 %v117, %v247
    %v249 = vpop.f32.mrf.mxu0
    %v250 = vpop.f32.mrf.mxu0
    %v251 = vpop.f32.mrf.mxu0
    %252 = vdwg.mxu0
    %v253 = vmax.f32 %v200, 0.0
    %v254 = vmax.f32 %v203, 0.0
    %v255 = vmax.f32 %v208, 0.0
    %v256 = vmax.f32 %v211, 0.0
    %v257 = vmax.f32 %v216, 0.0
    %v258 = vmax.f32 %v219, 0.0
    %v259 = vmax.f32 %v224, 0.0
    %v260 = vmax.f32 %v227, 0.0
    %v261 = vmax.f32 %v232, 0.0
    %v262 = vmax.f32 %v235, 0.0
    %v263 = vmax.f32 %v240, 0.0
    %v264 = vmax.f32 %v243, 0.0
    %v265 = vmax.f32 %v248, 0.0
    %v266 = vpack.c.bf16 %v254, %v253
    %v267 = vpack.c.bf16 %v256, %v255
    %v268 = vpack.c.bf16 %v258, %v257
    %v269 = vpack.c.bf16 %v260, %v259
    %v270 = vpack.c.bf16 %v262, %v261
    %v271 = vpack.c.bf16 %v264, %v263
    %v272 = vpack.c.bf16 %v265, %v265
    %v273 = vlaneseq
    %v274 = vshrl.u32 %v273, 7
    %v275 = vadd.s32 %v274, 8
    %v276 = vadd.s32 %v274, 16
    %v277 = vadd.s32 %v274, 24
    %v278 = vadd.s32 %v274, 32
    %v279 = vadd.s32 %v274, 40
    %v280 = vadd.s32 %v274, 48
    %v281 = vadd.s32 %v274, 56
    %v282 = vadd.s32 %v274, 64
    %v283 = vadd.s32 %v274, 72
    %v284 = vadd.s32 %v274, 80
    %v285 = vadd.s32 %v274, 88
    %v286 = vadd.s32 %v274, 96
    %v287 = vcvt.s32.f32 %v274
    %v288 = vcvt.s32.f32 %v275
    %v289 = vcvt.s32.f32 %v276
    %v290 = vcvt.s32.f32 %v277
    %v291 = vcvt.s32.f32 %v278
    %v292 = vcvt.s32.f32 %v279
    %v293 = vcvt.s32.f32 %v280
    %v294 = vcvt.s32.f32 %v281
    %v295 = vcvt.s32.f32 %v282
    %v296 = vcvt.s32.f32 %v283
    %v297 = vcvt.s32.f32 %v284
    %v298 = vcvt.s32.f32 %v285
    %v299 = vcvt.s32.f32 %v286
    %v300 = vadd.f32 %v287, 0.5
    %v301 = vadd.f32 %v288, 0.5
    %v302 = vadd.f32 %v289, 0.5
    %v303 = vadd.f32 %v290, 0.5
    %v304 = vadd.f32 %v291, 0.5
    %v305 = vadd.f32 %v292, 0.5
    %v306 = vadd.f32 %v293, 0.5
    %v307 = vadd.f32 %v294, 0.5
    %v308 = vadd.f32 %v295, 0.5
    %v309 = vadd.f32 %v296, 0.5
    %v310 = vadd.f32 %v297, 0.5
    %v311 = vadd.f32 %v298, 0.5
    %v312 = vadd.f32 %v299, 0.5
    %v313 = vmul.f32 %v300, 0.1
    %v314 = vmul.f32 %v301, 0.1
    %v315 = vmul.f32 %v302, 0.1
    %v316 = vmul.f32 %v303, 0.1
    %v317 = vmul.f32 %v304, 0.1
    %v318 = vmul.f32 %v305, 0.1
    %v319 = vmul.f32 %v306, 0.1
    %v320 = vmul.f32 %v307, 0.1
    %v321 = vmul.f32 %v308, 0.1
    %v322 = vmul.f32 %v309, 0.1
    %v323 = vmul.f32 %v310, 0.1
    %v324 = vmul.f32 %v311, 0.1
    %v325 = vmul.f32 %v312, 0.1
    %v326 = vfloor.f32 %v313
    %v327 = vfloor.f32 %v314
    %v328 = vfloor.f32 %v315
    %v329 = vfloor.f32 %v316
    %v330 = vfloor.f32 %v317
    %v331 = vfloor.f32 %v318
    %v332 = vfloor.f32 %v319
    %v333 = vfloor.f32 %v320
    %v334 = vfloor.f32 %v321
    %v335 = vfloor.f32 %v322
    %v336 = vfloor.f32 %v323
    %v337 = vfloor.f32 %v324
    %v338 = vfloor.f32 %v325
    %v339 = vmul.f32 %v326, 10.0
    %v340 = vmul.f32 %v327, 10.0
    %v341 = vmul.f32 %v328, 10.0
    %v342 = vmul.f32 %v329, 10.0
    %v343 = vmul.f32 %v330, 10.0
    %v344 = vmul.f32 %v331, 10.0
    %v345 = vmul.f32 %v332, 10.0
    %v346 = vmul.f32 %v333, 10.0
    %v347 = vmul.f32 %v334, 10.0
    %v348 = vmul.f32 %v335, 10.0
    %v349 = vmul.f32 %v336, 10.0
    %v350 = vmul.f32 %v337, 10.0
    %v351 = vmul.f32 %v338, 10.0
    %v352 = vsub.f32 %v287, %v339
    %v353 = vsub.f32 %v288, %v340
    %v354 = vsub.f32 %v289, %v341
    %v355 = vsub.f32 %v290, %v342
    %v356 = vsub.f32 %v291, %v343
    %v357 = vsub.f32 %v292, %v344
    %v358 = vsub.f32 %v293, %v345
    %v359 = vsub.f32 %v294, %v346
    %v360 = vsub.f32 %v295, %v347
    %v361 = vsub.f32 %v296, %v348
    %v362 = vsub.f32 %v297, %v349
    %v363 = vsub.f32 %v298, %v350
    %v364 = vsub.f32 %v299, %v351
    %vm365 = vcmp.gt.f32.partialorder %v326, 0.5
    %vm366 = vcmp.gt.f32.partialorder %v327, 0.5
    %vm367 = vcmp.gt.f32.partialorder %v328, 0.5
    %vm368 = vcmp.gt.f32.partialorder %v329, 0.5
    %vm369 = vcmp.gt.f32.partialorder %v330, 0.5
    %vm370 = vcmp.gt.f32.partialorder %v331, 0.5
    %vm371 = vcmp.gt.f32.partialorder %v332, 0.5
    %vm372 = vcmp.gt.f32.partialorder %v333, 0.5
    %vm373 = vcmp.gt.f32.partialorder %v334, 0.5
    %vm374 = vcmp.gt.f32.partialorder %v335, 0.5
    %vm375 = vcmp.gt.f32.partialorder %v336, 0.5
    %vm376 = vcmp.gt.f32.partialorder %v337, 0.5
    %vm377 = vcmp.gt.f32.partialorder %v338, 0.5
    %vm378 = vcmp.lt.f32.partialorder %v326, 8.5
    %vm379 = vcmp.lt.f32.partialorder %v327, 8.5
    %vm380 = vcmp.lt.f32.partialorder %v328, 8.5
    %vm381 = vcmp.lt.f32.partialorder %v329, 8.5
    %vm382 = vcmp.lt.f32.partialorder %v330, 8.5
    %vm383 = vcmp.lt.f32.partialorder %v331, 8.5
    %vm384 = vcmp.lt.f32.partialorder %v332, 8.5
    %vm385 = vcmp.lt.f32.partialorder %v333, 8.5
    %vm386 = vcmp.lt.f32.partialorder %v334, 8.5
    %vm387 = vcmp.lt.f32.partialorder %v335, 8.5
    %vm388 = vcmp.lt.f32.partialorder %v336, 8.5
    %vm389 = vcmp.lt.f32.partialorder %v337, 8.5
    %vm390 = vcmp.lt.f32.partialorder %v338, 8.5
    %vm391 = vmand %vm365, %vm378
    %vm392 = vmand %vm366, %vm379
    %vm393 = vmand %vm367, %vm380
    %vm394 = vmand %vm368, %vm381
    %vm395 = vmand %vm369, %vm382
    %vm396 = vmand %vm370, %vm383
    %vm397 = vmand %vm371, %vm384
    %vm398 = vmand %vm372, %vm385
    %vm399 = vmand %vm373, %vm386
    %vm400 = vmand %vm374, %vm387
    %vm401 = vmand %vm375, %vm388
    %vm402 = vmand %vm376, %vm389
    %vm403 = vmand %vm377, %vm390
    %vm404 = vcmp.gt.f32.partialorder %v352, 0.5
    %vm405 = vcmp.gt.f32.partialorder %v353, 0.5
    %vm406 = vcmp.gt.f32.partialorder %v354, 0.5
    %vm407 = vcmp.gt.f32.partialorder %v355, 0.5
    %vm408 = vcmp.gt.f32.partialorder %v356, 0.5
    %vm409 = vcmp.gt.f32.partialorder %v357, 0.5
    %vm410 = vcmp.gt.f32.partialorder %v358, 0.5
    %vm411 = vcmp.gt.f32.partialorder %v359, 0.5
    %vm412 = vcmp.gt.f32.partialorder %v360, 0.5
    %vm413 = vcmp.gt.f32.partialorder %v361, 0.5
    %vm414 = vcmp.gt.f32.partialorder %v362, 0.5
    %vm415 = vcmp.gt.f32.partialorder %v363, 0.5
    %vm416 = vcmp.gt.f32.partialorder %v364, 0.5
    %vm417 = vmand %vm391, %vm404
    %vm418 = vmand %vm392, %vm405
    %vm419 = vmand %vm393, %vm406
    %vm420 = vmand %vm394, %vm407
    %vm421 = vmand %vm395, %vm408
    %vm422 = vmand %vm396, %vm409
    %vm423 = vmand %vm397, %vm410
    %vm424 = vmand %vm398, %vm411
    %vm425 = vmand %vm399, %vm412
    %vm426 = vmand %vm400, %vm413
    %vm427 = vmand %vm401, %vm414
    %vm428 = vmand %vm402, %vm415
    %vm429 = vmand %vm403, %vm416
    %vm430 = vcmp.lt.f32.partialorder %v352, 8.5
    %vm431 = vcmp.lt.f32.partialorder %v353, 8.5
    %vm432 = vcmp.lt.f32.partialorder %v354, 8.5
    %vm433 = vcmp.lt.f32.partialorder %v355, 8.5
    %vm434 = vcmp.lt.f32.partialorder %v356, 8.5
    %vm435 = vcmp.lt.f32.partialorder %v357, 8.5
    %vm436 = vcmp.lt.f32.partialorder %v358, 8.5
    %vm437 = vcmp.lt.f32.partialorder %v359, 8.5
    %vm438 = vcmp.lt.f32.partialorder %v360, 8.5
    %vm439 = vcmp.lt.f32.partialorder %v361, 8.5
    %vm440 = vcmp.lt.f32.partialorder %v362, 8.5
    %vm441 = vcmp.lt.f32.partialorder %v363, 8.5
    %vm442 = vcmp.lt.f32.partialorder %v364, 8.5
    %vm443 = vmand %vm417, %vm430
    %vm444 = vmand %vm418, %vm431
    %vm445 = vmand %vm419, %vm432
    %vm446 = vmand %vm420, %vm433
    %vm447 = vmand %vm421, %vm434
    %vm448 = vmand %vm422, %vm435
    %vm449 = vmand %vm423, %vm436
    %vm450 = vmand %vm424, %vm437
    %vm451 = vmand %vm425, %vm438
    %vm452 = vmand %vm426, %vm439
    %vm453 = vmand %vm427, %vm440
    %vm454 = vmand %vm428, %vm441
    %vm455 = vmand %vm429, %vm442
    %vm456 = vmpackc.low %vm443, %vm443
    %vm457 = vmpackc.low %vm444, %vm444
    %vm458 = vmpackc.low %vm445, %vm445
    %vm459 = vmpackc.low %vm446, %vm446
    %vm460 = vmpackc.low %vm447, %vm447
    %vm461 = vmpackc.low %vm448, %vm448
    %vm462 = vmpackc.low %vm449, %vm449
    %vm463 = vmpackc.low %vm450, %vm450
    %vm464 = vmpackc.low %vm451, %vm451
    %vm465 = vmpackc.low %vm452, %vm452
    %vm466 = vmpackc.low %vm453, %vm453
    %vm467 = vmpackc.low %vm454, %vm454
    %vm468 = vmpackc.low %vm455, %vm455
    %v469 = vsel %vm456, 65537, 0
    %v470 = vsel %vm457, 65537, 0
    %v471 = vsel %vm458, 65537, 0
    %v472 = vsel %vm459, 65537, 0
    %v473 = vsel %vm460, 65537, 0
    %v474 = vsel %vm461, 65537, 0
    %v475 = vsel %vm462, 65537, 0
    %v476 = vsel %vm463, 65537, 0
    %v477 = vsel %vm464, 65537, 0
    %v478 = vsel %vm465, 65537, 0
    %v479 = vsel %vm466, 65537, 0
    %v480 = vsel %vm467, 65537, 0
    %v481 = vsel %vm468, 65537, 0
    %v482 = vunpack.c.l.b16 %v469
    %v483 = vunpack.c.l.b16 %v470
    %v484 = vunpack.c.l.b16 %v471
    %v485 = vunpack.c.l.b16 %v472
    %v486 = vunpack.c.l.b16 %v473
    %v487 = vunpack.c.l.b16 %v474
    %v488 = vunpack.c.l.b16 %v475
    %v489 = vunpack.c.l.b16 %v476
    %v490 = vunpack.c.l.b16 %v477
    %v491 = vunpack.c.l.b16 %v478
    %v492 = vunpack.c.l.b16 %v479
    %v493 = vunpack.c.l.b16 %v480
    %v494 = vunpack.c.l.b16 %v481
    %v495 = vpack.c.b16 %v483, %v482
    %v496 = vpack.c.b16 %v485, %v484
    %v497 = vpack.c.b16 %v487, %v486
    %v498 = vpack.c.b16 %v489, %v488
    %v499 = vpack.c.b16 %v491, %v490
    %v500 = vpack.c.b16 %v493, %v492
    %v501 = vpack.c.b16 %v494, %v494
    %vm502 = vcmp.ne.s16.totalorder %v495, 0
    %vm503 = vcmp.ne.s16.totalorder %v496, 0
    %vm504 = vcmp.ne.s16.totalorder %v497, 0
    %vm505 = vcmp.ne.s16.totalorder %v498, 0
    %vm506 = vcmp.ne.s16.totalorder %v499, 0
    %vm507 = vcmp.ne.s16.totalorder %v500, 0
    %vm508 = vcmp.ne.s16.totalorder %v501, 0
    %v509 = vsel %vm502, %v266, 0
    %v510 = vsel %vm503, %v267, 0
    %v511 = vsel %vm504, %v268, 0
    %v512 = vsel %vm505, %v269, 0
    %v513 = vsel %vm506, %v270, 0
    %v514 = vsel %vm507, %v271, 0
    %v515 = vsel %vm508, %v272, 0
    %v523 = vunpack.c.l.b16 %v509
    %v524 = vunpack.c.h.b16 %v509
    %v525 = vunpack.c.l.b16 %v510
    %v526 = vunpack.c.h.b16 %v510
    %v527 = vunpack.c.l.b16 %v511
    %v528 = vunpack.c.h.b16 %v511
    %v529 = vunpack.c.l.b16 %v512
    %v530 = vunpack.c.h.b16 %v512
    %v531 = vunpack.c.l.b16 %v513
    %v532 = vunpack.c.h.b16 %v513
    %v533 = vunpack.c.l.b16 %v514
    %v534 = vunpack.c.h.b16 %v514
    %v535 = vunpack.c.l.b16 %v515
    %v536 = vpack.c.b16 %v523, %v523
    %v537 = vpack.c.b16 %v524, %v524
    %v538 = vpack.c.b16 %v525, %v525
    %v539 = vpack.c.b16 %v526, %v526
    %v540 = vpack.c.b16 %v527, %v527
    %v541 = vpack.c.b16 %v528, %v528
    %v542 = vpack.c.b16 %v529, %v529
    %v543 = vpack.c.b16 %v530, %v530
    %v544 = vpack.c.b16 %v531, %v531
    %v545 = vpack.c.b16 %v532, %v532
    %v546 = vpack.c.b16 %v533, %v533
    %v547 = vpack.c.b16 %v534, %v534
    %v548 = vpack.c.b16 %v535, %v535
    %562 = vst [vmem:[#allocation2 + $0x8] sm:$0xf] %v536
    %563 = vst [vmem:[#allocation2 + $0xc] sm:$0xf] %v537
    %564 = vst [vmem:[#allocation2 + $0x10] sm:$0xf] %v538
    %565 = vst [vmem:[#allocation2 + $0x14] sm:$0xf] %v539
    %566 = vst [vmem:[#allocation2 + $0x18] sm:$0xf] %v540
    %567 = vst [vmem:[#allocation2 + $0x1c] sm:$0xf] %v541
    %568 = vst [vmem:[#allocation2 + $0x20] sm:$0xf] %v542
    %569 = vst [vmem:[#allocation2 + $0x24] sm:$0xf] %v543
    %570 = vst [vmem:[#allocation2 + $0x28] sm:$0xf] %v544
    %571 = vst [vmem:[#allocation2 + $0x2c] sm:$0xf] %v545
    %572 = vst [vmem:[#allocation2 + $0x30] sm:$0xf] %v546
    %573 = vst [vmem:[#allocation2 + $0x34] sm:$0xf] %v547
    %574 = vst [vmem:[#allocation2 + $0x38] sm:$0x3] %v548
    %575 = vst [vmem:[#allocation2] sm:$0xf] 0
    %576 = vst [vmem:[#allocation2 + $0x4] sm:$0xf] 0
    %577 = vst [vmem:[#allocation2 + $0x38] sm:$0xc] 0
    %578 = vst [vmem:[#allocation2 + $0x3c] sm:$0xf] 0
    %579 = vst [vmem:[#allocation2 + $0x40] sm:$0x3] 0
    %v580 = vld [vmem:[#allocation2] sm:$0xc]
    %v581 = vld [vmem:[#allocation2 + $0x4] sm:$0xf]
    %v582 = vld [vmem:[#allocation2 + $0x8] sm:$0xf]
    %v583 = vld [vmem:[#allocation2 + $0xc] sm:$0xf]
    %v584 = vld [vmem:[#allocation2 + $0x10] sm:$0xf]
    %v585 = vld [vmem:[#allocation2 + $0x14] sm:$0xf]
    %v586 = vld [vmem:[#allocation2 + $0x18] sm:$0xf]
    %v587 = vld [vmem:[#allocation2 + $0x1c] sm:$0xf]
    %v588 = vld [vmem:[#allocation2 + $0x20] sm:$0xf]
    %v589 = vld [vmem:[#allocation2 + $0x24] sm:$0xf]
    %v590 = vld [vmem:[#allocation2 + $0x28] sm:$0xf]
    %v591 = vld [vmem:[#allocation2 + $0x2c] sm:$0xf]
    %v592 = vld [vmem:[#allocation2 + $0x30] sm:$0xf]
    %v593 = vld [vmem:[#allocation2 + $0x34] sm:$0x1]
    %vm594 = vsmask.f32 1280
    %vm595 = vsmask.f32 5392
    %vm596 = vmor %vm594, %vm595
    %v598 = vshrl.u32 %v580, 16
    %v600 = vrot.slane %v598, 6
    %v601 = vshll.u32 %v580, 16
    %v603 = vrot.slane %v601, 7
    %v604 = vor.u32 %v600, %v603
    %v605 = vrot.slane %v604, 4
    %v607 = vshrl.u32 %v581, 16
    %v609 = vrot.slane %v607, 6
    %v610 = vshll.u32 %v581, 16
    %v612 = vrot.slane %v610, 7
    %v613 = vor.u32 %v609, %v612
    %v614 = vsel %vm596, %v605, %v613
    %v615 = vrot.slane %v613, 4
    %v617 = vshrl.u32 %v582, 16
    %v619 = vrot.slane %v617, 6
    %v620 = vshll.u32 %v582, 16
    %v622 = vrot.slane %v620, 7
    %v623 = vor.u32 %v619, %v622
    %v624 = vsel %vm596, %v615, %v623
    %v625 = vrot.slane %v623, 4
    %v627 = vshrl.u32 %v583, 16
    %v629 = vrot.slane %v627, 6
    %v630 = vshll.u32 %v583, 16
    %v632 = vrot.slane %v630, 7
    %v633 = vor.u32 %v629, %v632
    %v634 = vsel %vm596, %v625, %v633
    %v635 = vrot.slane %v633, 4
    %v637 = vshrl.u32 %v584, 16
    %v639 = vrot.slane %v637, 6
    %v640 = vshll.u32 %v584, 16
    %v642 = vrot.slane %v640, 7
    %v643 = vor.u32 %v639, %v642
    %v644 = vsel %vm596, %v635, %v643
    %v645 = vrot.slane %v643, 4
    %v647 = vshrl.u32 %v585, 16
    %v649 = vrot.slane %v647, 6
    %v650 = vshll.u32 %v585, 16
    %v652 = vrot.slane %v650, 7
    %v653 = vor.u32 %v649, %v652
    %v654 = vsel %vm596, %v645, %v653
    %v655 = vrot.slane %v653, 4
    %v657 = vshrl.u32 %v586, 16
    %v659 = vrot.slane %v657, 6
    %v660 = vshll.u32 %v586, 16
    %v662 = vrot.slane %v660, 7
    %v663 = vor.u32 %v659, %v662
    %v664 = vsel %vm596, %v655, %v663
    %v665 = vrot.slane %v663, 4
    %v667 = vshrl.u32 %v587, 16
    %v669 = vrot.slane %v667, 6
    %v670 = vshll.u32 %v587, 16
    %v672 = vrot.slane %v670, 7
    %v673 = vor.u32 %v669, %v672
    %v674 = vsel %vm596, %v665, %v673
    %v675 = vrot.slane %v673, 4
    %v677 = vshrl.u32 %v588, 16
    %v679 = vrot.slane %v677, 6
    %v680 = vshll.u32 %v588, 16
    %v682 = vrot.slane %v680, 7
    %v683 = vor.u32 %v679, %v682
    %v684 = vsel %vm596, %v675, %v683
    %v685 = vrot.slane %v683, 4
    %v687 = vshrl.u32 %v589, 16
    %v689 = vrot.slane %v687, 6
    %v690 = vshll.u32 %v589, 16
    %v692 = vrot.slane %v690, 7
    %v693 = vor.u32 %v689, %v692
    %v694 = vsel %vm596, %v685, %v693
    %v695 = vrot.slane %v693, 4
    %v697 = vshrl.u32 %v590, 16
    %v699 = vrot.slane %v697, 6
    %v700 = vshll.u32 %v590, 16
    %v702 = vrot.slane %v700, 7
    %v703 = vor.u32 %v699, %v702
    %v704 = vsel %vm596, %v695, %v703
    %v705 = vrot.slane %v703, 4
    %v707 = vshrl.u32 %v591, 16
    %v709 = vrot.slane %v707, 6
    %v710 = vshll.u32 %v591, 16
    %v712 = vrot.slane %v710, 7
    %v713 = vor.u32 %v709, %v712
    %v714 = vsel %vm596, %v705, %v713
    %v715 = vrot.slane %v713, 4
    %v717 = vshrl.u32 %v592, 16
    %v719 = vrot.slane %v717, 6
    %v720 = vshll.u32 %v592, 16
    %v722 = vrot.slane %v720, 7
    %v723 = vor.u32 %v719, %v722
    %v724 = vsel %vm596, %v715, %v723
    %v725 = vrot.slane %v723, 4
    %v727 = vshll.u32 %v593, 16
    %v729 = vrot.slane %v727, 7
    %v730 = vsel %vm596, %v725, %v729
    %744 = vst [vmem:[#allocation3] sm:$0xf] %v614
    %745 = vst [vmem:[#allocation3 + $0x24] sm:$0xf] %v624
    %746 = vst [vmem:[#allocation3 + $0x48] sm:$0xf] %v634
    %747 = vst [vmem:[#allocation3 + $0x6c] sm:$0xf] %v644
    %748 = vst [vmem:[#allocation3 + $0x90] sm:$0xf] %v654
    %749 = vst [vmem:[#allocation3 + $0xb4] sm:$0xf] %v664
    %750 = vst [vmem:[#allocation3 + $0xd8] sm:$0xf] %v674
    %751 = vst [vmem:[#allocation3 + $0xfc] sm:$0xf] %v684
    %752 = vst [vmem:[#allocation3 + $0x120] sm:$0xf] %v694
    %753 = vst [vmem:[#allocation3 + $0x144] sm:$0xf] %v704
    %754 = vst [vmem:[#allocation3 + $0x168] sm:$0xf] %v714
    %755 = vst [vmem:[#allocation3 + $0x18c] sm:$0xf] %v724
    %756 = vst [vmem:[#allocation3 + $0x1b0] sm:$0x3] %v730
    %v757 = vld [vmem:[#allocation2] sm:$0x8]
    %v758 = vld [vmem:[#allocation2 + $0x4] sm:$0xf]
    %v759 = vld [vmem:[#allocation2 + $0x8] sm:$0xf]
    %v760 = vld [vmem:[#allocation2 + $0xc] sm:$0xf]
    %v761 = vld [vmem:[#allocation2 + $0x10] sm:$0xf]
    %v762 = vld [vmem:[#allocation2 + $0x14] sm:$0xf]
    %v763 = vld [vmem:[#allocation2 + $0x18] sm:$0xf]
    %v764 = vld [vmem:[#allocation2 + $0x1c] sm:$0xf]
    %v765 = vld [vmem:[#allocation2 + $0x20] sm:$0xf]
    %v766 = vld [vmem:[#allocation2 + $0x24] sm:$0xf]
    %v767 = vld [vmem:[#allocation2 + $0x28] sm:$0xf]
    %v768 = vld [vmem:[#allocation2 + $0x2c] sm:$0xf]
    %v769 = vld [vmem:[#allocation2 + $0x30] sm:$0xf]
    %v770 = vld [vmem:[#allocation2 + $0x34] sm:$0x1]
    %vm785 = vcmask 1040384
    %vm786 = vcmask 1044484
    %vm787 = vmor %vm785, %vm786
    %v788 = vrot.slane %v757, 7
    %v789 = vrot.slane %v788, 4
    %v790 = vrot.slane %v758, 7
    %v791 = vsel %vm787, %v789, %v790
    %v792 = vrot.slane %v790, 4
    %v793 = vrot.slane %v759, 7
    %v794 = vsel %vm787, %v792, %v793
    %v795 = vrot.slane %v793, 4
    %v796 = vrot.slane %v760, 7
    %v797 = vsel %vm787, %v795, %v796
    %v798 = vrot.slane %v796, 4
    %v799 = vrot.slane %v761, 7
    %v800 = vsel %vm787, %v798, %v799
    %v801 = vrot.slane %v799, 4
    %v802 = vrot.slane %v762, 7
    %v803 = vsel %vm787, %v801, %v802
    %v804 = vrot.slane %v802, 4
    %v805 = vrot.slane %v763, 7
    %v806 = vsel %vm787, %v804, %v805
    %v807 = vrot.slane %v805, 4
    %v808 = vrot.slane %v764, 7
    %v809 = vsel %vm787, %v807, %v808
    %v810 = vrot.slane %v808, 4
    %v811 = vrot.slane %v765, 7
    %v812 = vsel %vm787, %v810, %v811
    %v813 = vrot.slane %v811, 4
    %v814 = vrot.slane %v766, 7
    %v815 = vsel %vm787, %v813, %v814
    %v816 = vrot.slane %v814, 4
    %v817 = vrot.slane %v767, 7
    %v818 = vsel %vm787, %v816, %v817
    %v819 = vrot.slane %v817, 4
    %v820 = vrot.slane %v768, 7
    %v821 = vsel %vm787, %v819, %v820
    %v822 = vrot.slane %v820, 4
    %v823 = vrot.slane %v769, 7
    %v824 = vsel %vm787, %v822, %v823
    %v825 = vrot.slane %v823, 4
    %v826 = vrot.slane %v770, 7
    %v827 = vsel %vm787, %v825, %v826
    %841 = vst [vmem:[#allocation3 + $0x4] sm:$0xf] %v791
    %842 = vst [vmem:[#allocation3 + $0x28] sm:$0xf] %v794
    %843 = vst [vmem:[#allocation3 + $0x4c] sm:$0xf] %v797
    %844 = vst [vmem:[#allocation3 + $0x70] sm:$0xf] %v800
    %845 = vst [vmem:[#allocation3 + $0x94] sm:$0xf] %v803
    %846 = vst [vmem:[#allocation3 + $0xb8] sm:$0xf] %v806
    %847 = vst [vmem:[#allocation3 + $0xdc] sm:$0xf] %v809
    %848 = vst [vmem:[#allocation3 + $0x100] sm:$0xf] %v812
    %849 = vst [vmem:[#allocation3 + $0x124] sm:$0xf] %v815
    %850 = vst [vmem:[#allocation3 + $0x148] sm:$0xf] %v818
    %851 = vst [vmem:[#allocation3 + $0x16c] sm:$0xf] %v821
    %852 = vst [vmem:[#allocation3 + $0x190] sm:$0xf] %v824
    %853 = vst [vmem:[#allocation3 + $0x1b4] sm:$0x3] %v827
    %v854 = vld [vmem:[#allocation2] sm:$0x8]
    %v855 = vld [vmem:[#allocation2 + $0x4] sm:$0xf]
    %v856 = vld [vmem:[#allocation2 + $0x8] sm:$0xf]
    %v857 = vld [vmem:[#allocation2 + $0xc] sm:$0xf]
    %v858 = vld [vmem:[#allocation2 + $0x10] sm:$0xf]
    %v859 = vld [vmem:[#allocation2 + $0x14] sm:$0xf]
    %v860 = vld [vmem:[#allocation2 + $0x18] sm:$0xf]
    %v861 = vld [vmem:[#allocation2 + $0x1c] sm:$0xf]
    %v862 = vld [vmem:[#allocation2 + $0x20] sm:$0xf]
    %v863 = vld [vmem:[#allocation2 + $0x24] sm:$0xf]
    %v864 = vld [vmem:[#allocation2 + $0x28] sm:$0xf]
    %v865 = vld [vmem:[#allocation2 + $0x2c] sm:$0xf]
    %v866 = vld [vmem:[#allocation2 + $0x30] sm:$0xf]
    %v867 = vld [vmem:[#allocation2 + $0x34] sm:$0x3]
    %vm868 = vsmask.f32 256
    %vm869 = vsmask.f32 4368
    %vm870 = vmor %vm868, %vm869
    %v872 = vshrl.u32 %v854, 16
    %v874 = vrot.slane %v872, 7
    %v875 = vrot.slane %v874, 4
    %v877 = vshrl.u32 %v855, 16
    %v879 = vrot.slane %v877, 7
    %v880 = vshll.u32 %v855, 16
    %v882 = vor.u32 %v879, %v880
    %v883 = vsel %vm870, %v875, %v882
    %v884 = vrot.slane %v879, 4
    %v886 = vshrl.u32 %v856, 16
    %v888 = vrot.slane %v886, 7
    %v889 = vshll.u32 %v856, 16
    %v891 = vor.u32 %v888, %v889
    %v892 = vsel %vm870, %v884, %v891
    %v893 = vrot.slane %v888, 4
    %v895 = vshrl.u32 %v857, 16
    %v897 = vrot.slane %v895, 7
    %v898 = vshll.u32 %v857, 16
    %v900 = vor.u32 %v897, %v898
    %v901 = vsel %vm870, %v893, %v900
    %v902 = vrot.slane %v897, 4
    %v904 = vshrl.u32 %v858, 16
    %v906 = vrot.slane %v904, 7
    %v907 = vshll.u32 %v858, 16
    %v909 = vor.u32 %v906, %v907
    %v910 = vsel %vm870, %v902, %v909
    %v911 = vrot.slane %v906, 4
    %v913 = vshrl.u32 %v859, 16
    %v915 = vrot.slane %v913, 7
    %v916 = vshll.u32 %v859, 16
    %v918 = vor.u32 %v915, %v916
    %v919 = vsel %vm870, %v911, %v918
    %v920 = vrot.slane %v915, 4
    %v922 = vshrl.u32 %v860, 16
    %v924 = vrot.slane %v922, 7
    %v925 = vshll.u32 %v860, 16
    %v927 = vor.u32 %v924, %v925
    %v928 = vsel %vm870, %v920, %v927
    %v929 = vrot.slane %v924, 4
    %v931 = vshrl.u32 %v861, 16
    %v933 = vrot.slane %v931, 7
    %v934 = vshll.u32 %v861, 16
    %v936 = vor.u32 %v933, %v934
    %v937 = vsel %vm870, %v929, %v936
    %v938 = vrot.slane %v933, 4
    %v940 = vshrl.u32 %v862, 16
    %v942 = vrot.slane %v940, 7
    %v943 = vshll.u32 %v862, 16
    %v945 = vor.u32 %v942, %v943
    %v946 = vsel %vm870, %v938, %v945
    %v947 = vrot.slane %v942, 4
    %v949 = vshrl.u32 %v863, 16
    %v951 = vrot.slane %v949, 7
    %v952 = vshll.u32 %v863, 16
    %v954 = vor.u32 %v951, %v952
    %v955 = vsel %vm870, %v947, %v954
    %v956 = vrot.slane %v951, 4
    %v958 = vshrl.u32 %v864, 16
    %v960 = vrot.slane %v958, 7
    %v961 = vshll.u32 %v864, 16
    %v963 = vor.u32 %v960, %v961
    %v964 = vsel %vm870, %v956, %v963
    %v965 = vrot.slane %v960, 4
    %v967 = vshrl.u32 %v865, 16
    %v969 = vrot.slane %v967, 7
    %v970 = vshll.u32 %v865, 16
    %v972 = vor.u32 %v969, %v970
    %v973 = vsel %vm870, %v965, %v972
    %v974 = vrot.slane %v969, 4
    %v976 = vshrl.u32 %v866, 16
    %v978 = vrot.slane %v976, 7
    %v979 = vshll.u32 %v866, 16
    %v981 = vor.u32 %v978, %v979
    %v982 = vsel %vm870, %v974, %v981
    %v983 = vrot.slane %v978, 4
    %v985 = vshrl.u32 %v867, 16
    %v987 = vrot.slane %v985, 7
    %v988 = vshll.u32 %v867, 16
    %v990 = vor.u32 %v987, %v988
    %v991 = vsel %vm870, %v983, %v990
    %1005 = vst [vmem:[#allocation3 + $0x8] sm:$0xf] %v883
    %1006 = vst [vmem:[#allocation3 + $0x2c] sm:$0xf] %v892
    %1007 = vst [vmem:[#allocation3 + $0x50] sm:$0xf] %v901
    %1008 = vst [vmem:[#allocation3 + $0x74] sm:$0xf] %v910
    %1009 = vst [vmem:[#allocation3 + $0x98] sm:$0xf] %v919
    %1010 = vst [vmem:[#allocation3 + $0xbc] sm:$0xf] %v928
    %1011 = vst [vmem:[#allocation3 + $0xe0] sm:$0xf] %v937
    %1012 = vst [vmem:[#allocation3 + $0x104] sm:$0xf] %v946
    %1013 = vst [vmem:[#allocation3 + $0x128] sm:$0xf] %v955
    %1014 = vst [vmem:[#allocation3 + $0x14c] sm:$0xf] %v964
    %1015 = vst [vmem:[#allocation3 + $0x170] sm:$0xf] %v973
    %1016 = vst [vmem:[#allocation3 + $0x194] sm:$0xf] %v982
    %1017 = vst [vmem:[#allocation3 + $0x1b8] sm:$0x3] %v991
    %v1018 = vld [vmem:[#allocation2 + $0x4] sm:$0x8]
    %v1019 = vld [vmem:[#allocation2 + $0x8] sm:$0xf]
    %v1020 = vld [vmem:[#allocation2 + $0xc] sm:$0xf]
    %v1021 = vld [vmem:[#allocation2 + $0x10] sm:$0xf]
    %v1022 = vld [vmem:[#allocation2 + $0x14] sm:$0xf]
    %v1023 = vld [vmem:[#allocation2 + $0x18] sm:$0xf]
    %v1024 = vld [vmem:[#allocation2 + $0x1c] sm:$0xf]
    %v1025 = vld [vmem:[#allocation2 + $0x20] sm:$0xf]
    %v1026 = vld [vmem:[#allocation2 + $0x24] sm:$0xf]
    %v1027 = vld [vmem:[#allocation2 + $0x28] sm:$0xf]
    %v1028 = vld [vmem:[#allocation2 + $0x2c] sm:$0xf]
    %v1029 = vld [vmem:[#allocation2 + $0x30] sm:$0xf]
    %v1030 = vld [vmem:[#allocation2 + $0x34] sm:$0xf]
    %v1031 = vld [vmem:[#allocation2 + $0x38] sm:$0x3]
    %v1033 = vshrl.u32 %v1018, 16
    %v1035 = vrot.slane %v1033, 7
    %v1036 = vrot.slane %v1035, 4
    %v1038 = vshrl.u32 %v1019, 16
    %v1040 = vrot.slane %v1038, 7
    %v1041 = vshll.u32 %v1019, 16
    %v1043 = vor.u32 %v1040, %v1041
    %v1044 = vsel %vm870, %v1036, %v1043
    %v1045 = vrot.slane %v1040, 4
    %v1047 = vshrl.u32 %v1020, 16
    %v1049 = vrot.slane %v1047, 7
    %v1050 = vshll.u32 %v1020, 16
    %v1052 = vor.u32 %v1049, %v1050
    %v1053 = vsel %vm870, %v1045, %v1052
    %v1054 = vrot.slane %v1049, 4
    %v1056 = vshrl.u32 %v1021, 16
    %v1058 = vrot.slane %v1056, 7
    %v1059 = vshll.u32 %v1021, 16
    %v1061 = vor.u32 %v1058, %v1059
    %v1062 = vsel %vm870, %v1054, %v1061
    %v1063 = vrot.slane %v1058, 4
    %v1065 = vshrl.u32 %v1022, 16
    %v1067 = vrot.slane %v1065, 7
    %v1068 = vshll.u32 %v1022, 16
    %v1070 = vor.u32 %v1067, %v1068
    %v1071 = vsel %vm870, %v1063, %v1070
    %v1072 = vrot.slane %v1067, 4
    %v1074 = vshrl.u32 %v1023, 16
    %v1076 = vrot.slane %v1074, 7
    %v1077 = vshll.u32 %v1023, 16
    %v1079 = vor.u32 %v1076, %v1077
    %v1080 = vsel %vm870, %v1072, %v1079
    %v1081 = vrot.slane %v1076, 4
    %v1083 = vshrl.u32 %v1024, 16
    %v1085 = vrot.slane %v1083, 7
    %v1086 = vshll.u32 %v1024, 16
    %v1088 = vor.u32 %v1085, %v1086
    %v1089 = vsel %vm870, %v1081, %v1088
    %v1090 = vrot.slane %v1085, 4
    %v1092 = vshrl.u32 %v1025, 16
    %v1094 = vrot.slane %v1092, 7
    %v1095 = vshll.u32 %v1025, 16
    %v1097 = vor.u32 %v1094, %v1095
    %v1098 = vsel %vm870, %v1090, %v1097
    %v1099 = vrot.slane %v1094, 4
    %v1101 = vshrl.u32 %v1026, 16
    %v1103 = vrot.slane %v1101, 7
    %v1104 = vshll.u32 %v1026, 16
    %v1106 = vor.u32 %v1103, %v1104
    %v1107 = vsel %vm870, %v1099, %v1106
    %v1108 = vrot.slane %v1103, 4
    %v1110 = vshrl.u32 %v1027, 16
    %v1112 = vrot.slane %v1110, 7
    %v1113 = vshll.u32 %v1027, 16
    %v1115 = vor.u32 %v1112, %v1113
    %v1116 = vsel %vm870, %v1108, %v1115
    %v1117 = vrot.slane %v1112, 4
    %v1119 = vshrl.u32 %v1028, 16
    %v1121 = vrot.slane %v1119, 7
    %v1122 = vshll.u32 %v1028, 16
    %v1124 = vor.u32 %v1121, %v1122
    %v1125 = vsel %vm870, %v1117, %v1124
    %v1126 = vrot.slane %v1121, 4
    %v1128 = vshrl.u32 %v1029, 16
    %v1130 = vrot.slane %v1128, 7
    %v1131 = vshll.u32 %v1029, 16
    %v1133 = vor.u32 %v1130, %v1131
    %v1134 = vsel %vm870, %v1126, %v1133
    %v1135 = vrot.slane %v1130, 4
    %v1137 = vshrl.u32 %v1030, 16
    %v1139 = vrot.slane %v1137, 7
    %v1140 = vshll.u32 %v1030, 16
    %v1142 = vor.u32 %v1139, %v1140
    %v1143 = vsel %vm870, %v1135, %v1142
    %v1144 = vrot.slane %v1139, 4
    %v1146 = vshrl.u32 %v1031, 16
    %v1148 = vrot.slane %v1146, 7
    %v1149 = vshll.u32 %v1031, 16
    %v1151 = vor.u32 %v1148, %v1149
    %v1152 = vsel %vm870, %v1144, %v1151
    %1166 = vst [vmem:[#allocation3 + $0xc] sm:$0xf] %v1044
    %1167 = vst [vmem:[#allocation3 + $0x30] sm:$0xf] %v1053
    %1168 = vst [vmem:[#allocation3 + $0x54] sm:$0xf] %v1062
    %1169 = vst [vmem:[#allocation3 + $0x78] sm:$0xf] %v1071
    %1170 = vst [vmem:[#allocation3 + $0x9c] sm:$0xf] %v1080
    %1171 = vst [vmem:[#allocation3 + $0xc0] sm:$0xf] %v1089
    %1172 = vst [vmem:[#allocation3 + $0xe4] sm:$0xf] %v1098
    %1173 = vst [vmem:[#allocation3 + $0x108] sm:$0xf] %v1107
    %1174 = vst [vmem:[#allocation3 + $0x12c] sm:$0xf] %v1116
    %1175 = vst [vmem:[#allocation3 + $0x150] sm:$0xf] %v1125
    %1176 = vst [vmem:[#allocation3 + $0x174] sm:$0xf] %v1134
    %1177 = vst [vmem:[#allocation3 + $0x198] sm:$0xf] %v1143
    %1178 = vst [vmem:[#allocation3 + $0x1bc] sm:$0x3] %v1152
    %v1179 = vld [vmem:[#allocation2 + $0x8] sm:$0xf]
    %v1180 = vld [vmem:[#allocation2 + $0xc] sm:$0xf]
    %v1181 = vld [vmem:[#allocation2 + $0x10] sm:$0xf]
    %v1182 = vld [vmem:[#allocation2 + $0x14] sm:$0xf]
    %v1183 = vld [vmem:[#allocation2 + $0x18] sm:$0xf]
    %v1184 = vld [vmem:[#allocation2 + $0x1c] sm:$0xf]
    %v1185 = vld [vmem:[#allocation2 + $0x20] sm:$0xf]
    %v1186 = vld [vmem:[#allocation2 + $0x24] sm:$0xf]
    %v1187 = vld [vmem:[#allocation2 + $0x28] sm:$0xf]
    %v1188 = vld [vmem:[#allocation2 + $0x2c] sm:$0xf]
    %v1189 = vld [vmem:[#allocation2 + $0x30] sm:$0xf]
    %v1190 = vld [vmem:[#allocation2 + $0x34] sm:$0xf]
    %v1191 = vld [vmem:[#allocation2 + $0x38] sm:$0x3]
    %1192 = vst [vmem:[#allocation3 + $0x10] sm:$0xf] %v1179
    %1193 = vst [vmem:[#allocation3 + $0x34] sm:$0xf] %v1180
    %1194 = vst [vmem:[#allocation3 + $0x58] sm:$0xf] %v1181
    %1195 = vst [vmem:[#allocation3 + $0x7c] sm:$0xf] %v1182
    %1196 = vst [vmem:[#allocation3 + $0xa0] sm:$0xf] %v1183
    %1197 = vst [vmem:[#allocation3 + $0xc4] sm:$0xf] %v1184
    %1198 = vst [vmem:[#allocation3 + $0xe8] sm:$0xf] %v1185
    %1199 = vst [vmem:[#allocation3 + $0x10c] sm:$0xf] %v1186
    %1200 = vst [vmem:[#allocation3 + $0x130] sm:$0xf] %v1187
    %1201 = vst [vmem:[#allocation3 + $0x154] sm:$0xf] %v1188
    %1202 = vst [vmem:[#allocation3 + $0x178] sm:$0xf] %v1189
    %1203 = vst [vmem:[#allocation3 + $0x19c] sm:$0xf] %v1190
    %1204 = vst [vmem:[#allocation3 + $0x1c0] sm:$0x3] %v1191
    %v1205 = vld [vmem:[#allocation2 + $0x8] sm:$0xf]
    %v1206 = vld [vmem:[#allocation2 + $0xc] sm:$0xf]
    %v1207 = vld [vmem:[#allocation2 + $0x10] sm:$0xf]
    %v1208 = vld [vmem:[#allocation2 + $0x14] sm:$0xf]
    %v1209 = vld [vmem:[#allocation2 + $0x18] sm:$0xf]
    %v1210 = vld [vmem:[#allocation2 + $0x1c] sm:$0xf]
    %v1211 = vld [vmem:[#allocation2 + $0x20] sm:$0xf]
    %v1212 = vld [vmem:[#allocation2 + $0x24] sm:$0xf]
    %v1213 = vld [vmem:[#allocation2 + $0x28] sm:$0xf]
    %v1214 = vld [vmem:[#allocation2 + $0x2c] sm:$0xf]
    %v1215 = vld [vmem:[#allocation2 + $0x30] sm:$0xf]
    %v1216 = vld [vmem:[#allocation2 + $0x34] sm:$0xf]
    %v1217 = vld [vmem:[#allocation2 + $0x38] sm:$0x7]
    %vm1218 = vsmask.f32 3328
    %vm1219 = vsmask.f32 7440
    %vm1220 = vmor %vm1218, %vm1219
    %v1222 = vshrl.u32 %v1205, 16
    %v1224 = vrot.slane %v1222, 4
    %v1225 = vshll.u32 %v1205, 16
    %v1227 = vrot.slane %v1225, 5
    %v1228 = vor.u32 %v1224, %v1227
    %v1229 = vrot.slane %v1228, 4
    %v1231 = vshll.u32 %v1206, 16
    %v1233 = vrot.slane %v1231, 5
    %v1234 = vsel %vm1220, %v1229, %v1233
    %v1235 = vshrl.u32 %v1206, 16
    %v1237 = vrot.slane %v1235, 4
    %v1238 = vor.u32 %v1237, %v1233
    %v1239 = vrot.slane %v1238, 4
    %v1241 = vshll.u32 %v1207, 16
    %v1243 = vrot.slane %v1241, 5
    %v1244 = vsel %vm1220, %v1239, %v1243
    %v1245 = vshrl.u32 %v1207, 16
    %v1247 = vrot.slane %v1245, 4
    %v1248 = vor.u32 %v1247, %v1243
    %v1249 = vrot.slane %v1248, 4
    %v1251 = vshll.u32 %v1208, 16
    %v1253 = vrot.slane %v1251, 5
    %v1254 = vsel %vm1220, %v1249, %v1253
    %v1255 = vshrl.u32 %v1208, 16
    %v1257 = vrot.slane %v1255, 4
    %v1258 = vor.u32 %v1257, %v1253
    %v1259 = vrot.slane %v1258, 4
    %v1261 = vshll.u32 %v1209, 16
    %v1263 = vrot.slane %v1261, 5
    %v1264 = vsel %vm1220, %v1259, %v1263
    %v1265 = vshrl.u32 %v1209, 16
    %v1267 = vrot.slane %v1265, 4
    %v1268 = vor.u32 %v1267, %v1263
    %v1269 = vrot.slane %v1268, 4
    %v1271 = vshll.u32 %v1210, 16
    %v1273 = vrot.slane %v1271, 5
    %v1274 = vsel %vm1220, %v1269, %v1273
    %v1275 = vshrl.u32 %v1210, 16
    %v1277 = vrot.slane %v1275, 4
    %v1278 = vor.u32 %v1277, %v1273
    %v1279 = vrot.slane %v1278, 4
    %v1281 = vshll.u32 %v1211, 16
    %v1283 = vrot.slane %v1281, 5
    %v1284 = vsel %vm1220, %v1279, %v1283
    %v1285 = vshrl.u32 %v1211, 16
    %v1287 = vrot.slane %v1285, 4
    %v1288 = vor.u32 %v1287, %v1283
    %v1289 = vrot.slane %v1288, 4
    %v1291 = vshll.u32 %v1212, 16
    %v1293 = vrot.slane %v1291, 5
    %v1294 = vsel %vm1220, %v1289, %v1293
    %v1295 = vshrl.u32 %v1212, 16
    %v1297 = vrot.slane %v1295, 4
    %v1298 = vor.u32 %v1297, %v1293
    %v1299 = vrot.slane %v1298, 4
    %v1301 = vshll.u32 %v1213, 16
    %v1303 = vrot.slane %v1301, 5
    %v1304 = vsel %vm1220, %v1299, %v1303
    %v1305 = vshrl.u32 %v1213, 16
    %v1307 = vrot.slane %v1305, 4
    %v1308 = vor.u32 %v1307, %v1303
    %v1309 = vrot.slane %v1308, 4
    %v1311 = vshll.u32 %v1214, 16
    %v1313 = vrot.slane %v1311, 5
    %v1314 = vsel %vm1220, %v1309, %v1313
    %v1315 = vshrl.u32 %v1214, 16
    %v1317 = vrot.slane %v1315, 4
    %v1318 = vor.u32 %v1317, %v1313
    %v1319 = vrot.slane %v1318, 4
    %v1321 = vshll.u32 %v1215, 16
    %v1323 = vrot.slane %v1321, 5
    %v1324 = vsel %vm1220, %v1319, %v1323
    %v1325 = vshrl.u32 %v1215, 16
    %v1327 = vrot.slane %v1325, 4
    %v1328 = vor.u32 %v1327, %v1323
    %v1329 = vrot.slane %v1328, 4
    %v1331 = vshll.u32 %v1216, 16
    %v1333 = vrot.slane %v1331, 5
    %v1334 = vsel %vm1220, %v1329, %v1333
    %v1335 = vshrl.u32 %v1216, 16
    %v1337 = vrot.slane %v1335, 4
    %v1338 = vor.u32 %v1337, %v1333
    %v1339 = vrot.slane %v1338, 4
    %v1341 = vshll.u32 %v1217, 16
    %v1343 = vrot.slane %v1341, 5
    %v1344 = vsel %vm1220, %v1339, %v1343
    %v1345 = vshrl.u32 %v1217, 16
    %v1347 = vrot.slane %v1345, 4
    %v1348 = vor.u32 %v1347, %v1343
    %v1349 = vrot.slane %v1348, 4
    %1363 = vst [vmem:[#allocation3 + $0x14] sm:$0xf] %v1234
    %1364 = vst [vmem:[#allocation3 + $0x38] sm:$0xf] %v1244
    %1365 = vst [vmem:[#allocation3 + $0x5c] sm:$0xf] %v1254
    %1366 = vst [vmem:[#allocation3 + $0x80] sm:$0xf] %v1264
    %1367 = vst [vmem:[#allocation3 + $0xa4] sm:$0xf] %v1274
    %1368 = vst [vmem:[#allocation3 + $0xc8] sm:$0xf] %v1284
    %1369 = vst [vmem:[#allocation3 + $0xec] sm:$0xf] %v1294
    %1370 = vst [vmem:[#allocation3 + $0x110] sm:$0xf] %v1304
    %1371 = vst [vmem:[#allocation3 + $0x134] sm:$0xf] %v1314
    %1372 = vst [vmem:[#allocation3 + $0x158] sm:$0xf] %v1324
    %1373 = vst [vmem:[#allocation3 + $0x17c] sm:$0xf] %v1334
    %1374 = vst [vmem:[#allocation3 + $0x1a0] sm:$0xf] %v1344
    %1375 = vst [vmem:[#allocation3 + $0x1c4] sm:$0x3] %v1349
    %v1376 = vld [vmem:[#allocation2 + $0xc] sm:$0xf]
    %v1377 = vld [vmem:[#allocation2 + $0x10] sm:$0xf]
    %v1378 = vld [vmem:[#allocation2 + $0x14] sm:$0xf]
    %v1379 = vld [vmem:[#allocation2 + $0x18] sm:$0xf]
    %v1380 = vld [vmem:[#allocation2 + $0x1c] sm:$0xf]
    %v1381 = vld [vmem:[#allocation2 + $0x20] sm:$0xf]
    %v1382 = vld [vmem:[#allocation2 + $0x24] sm:$0xf]
    %v1383 = vld [vmem:[#allocation2 + $0x28] sm:$0xf]
    %v1384 = vld [vmem:[#allocation2 + $0x2c] sm:$0xf]
    %v1385 = vld [vmem:[#allocation2 + $0x30] sm:$0xf]
    %v1386 = vld [vmem:[#allocation2 + $0x34] sm:$0xf]
    %v1387 = vld [vmem:[#allocation2 + $0x38] sm:$0xf]
    %v1388 = vld [vmem:[#allocation2 + $0x3c] sm:$0x7]
    %v1390 = vshrl.u32 %v1376, 16
    %v1392 = vrot.slane %v1390, 4
    %v1393 = vshll.u32 %v1376, 16
    %v1395 = vrot.slane %v1393, 5
    %v1396 = vor.u32 %v1392, %v1395
    %v1397 = vrot.slane %v1396, 4
    %v1399 = vshll.u32 %v1377, 16
    %v1401 = vrot.slane %v1399, 5
    %v1402 = vsel %vm1220, %v1397, %v1401
    %v1403 = vshrl.u32 %v1377, 16
    %v1405 = vrot.slane %v1403, 4
    %v1406 = vor.u32 %v1405, %v1401
    %v1407 = vrot.slane %v1406, 4
    %v1409 = vshll.u32 %v1378, 16
    %v1411 = vrot.slane %v1409, 5
    %v1412 = vsel %vm1220, %v1407, %v1411
    %v1413 = vshrl.u32 %v1378, 16
    %v1415 = vrot.slane %v1413, 4
    %v1416 = vor.u32 %v1415, %v1411
    %v1417 = vrot.slane %v1416, 4
    %v1419 = vshll.u32 %v1379, 16
    %v1421 = vrot.slane %v1419, 5
    %v1422 = vsel %vm1220, %v1417, %v1421
    %v1423 = vshrl.u32 %v1379, 16
    %v1425 = vrot.slane %v1423, 4
    %v1426 = vor.u32 %v1425, %v1421
    %v1427 = vrot.slane %v1426, 4
    %v1429 = vshll.u32 %v1380, 16
    %v1431 = vrot.slane %v1429, 5
    %v1432 = vsel %vm1220, %v1427, %v1431
    %v1433 = vshrl.u32 %v1380, 16
    %v1435 = vrot.slane %v1433, 4
    %v1436 = vor.u32 %v1435, %v1431
    %v1437 = vrot.slane %v1436, 4
    %v1439 = vshll.u32 %v1381, 16
    %v1441 = vrot.slane %v1439, 5
    %v1442 = vsel %vm1220, %v1437, %v1441
    %v1443 = vshrl.u32 %v1381, 16
    %v1445 = vrot.slane %v1443, 4
    %v1446 = vor.u32 %v1445, %v1441
    %v1447 = vrot.slane %v1446, 4
    %v1449 = vshll.u32 %v1382, 16
    %v1451 = vrot.slane %v1449, 5
    %v1452 = vsel %vm1220, %v1447, %v1451
    %v1453 = vshrl.u32 %v1382, 16
    %v1455 = vrot.slane %v1453, 4
    %v1456 = vor.u32 %v1455, %v1451
    %v1457 = vrot.slane %v1456, 4
    %v1459 = vshll.u32 %v1383, 16
    %v1461 = vrot.slane %v1459, 5
    %v1462 = vsel %vm1220, %v1457, %v1461
    %v1463 = vshrl.u32 %v1383, 16
    %v1465 = vrot.slane %v1463, 4
    %v1466 = vor.u32 %v1465, %v1461
    %v1467 = vrot.slane %v1466, 4
    %v1469 = vshll.u32 %v1384, 16
    %v1471 = vrot.slane %v1469, 5
    %v1472 = vsel %vm1220, %v1467, %v1471
    %v1473 = vshrl.u32 %v1384, 16
    %v1475 = vrot.slane %v1473, 4
    %v1476 = vor.u32 %v1475, %v1471
    %v1477 = vrot.slane %v1476, 4
    %v1479 = vshll.u32 %v1385, 16
    %v1481 = vrot.slane %v1479, 5
    %v1482 = vsel %vm1220, %v1477, %v1481
    %v1483 = vshrl.u32 %v1385, 16
    %v1485 = vrot.slane %v1483, 4
    %v1486 = vor.u32 %v1485, %v1481
    %v1487 = vrot.slane %v1486, 4
    %v1489 = vshll.u32 %v1386, 16
    %v1491 = vrot.slane %v1489, 5
    %v1492 = vsel %vm1220, %v1487, %v1491
    %v1493 = vshrl.u32 %v1386, 16
    %v1495 = vrot.slane %v1493, 4
    %v1496 = vor.u32 %v1495, %v1491
    %v1497 = vrot.slane %v1496, 4
    %v1499 = vshll.u32 %v1387, 16
    %v1501 = vrot.slane %v1499, 5
    %v1502 = vsel %vm1220, %v1497, %v1501
    %v1503 = vshrl.u32 %v1387, 16
    %v1505 = vrot.slane %v1503, 4
    %v1506 = vor.u32 %v1505, %v1501
    %v1507 = vrot.slane %v1506, 4
    %v1509 = vshll.u32 %v1388, 16
    %v1511 = vrot.slane %v1509, 5
    %v1512 = vsel %vm1220, %v1507, %v1511
    %v1513 = vshrl.u32 %v1388, 16
    %v1515 = vrot.slane %v1513, 4
    %v1516 = vor.u32 %v1515, %v1511
    %v1517 = vrot.slane %v1516, 4
    %1531 = vst [vmem:[#allocation3 + $0x18] sm:$0xf] %v1402
    %1532 = vst [vmem:[#allocation3 + $0x3c] sm:$0xf] %v1412
    %1533 = vst [vmem:[#allocation3 + $0x60] sm:$0xf] %v1422
    %1534 = vst [vmem:[#allocation3 + $0x84] sm:$0xf] %v1432
    %1535 = vst [vmem:[#allocation3 + $0xa8] sm:$0xf] %v1442
    %1536 = vst [vmem:[#allocation3 + $0xcc] sm:$0xf] %v1452
    %1537 = vst [vmem:[#allocation3 + $0xf0] sm:$0xf] %v1462
    %1538 = vst [vmem:[#allocation3 + $0x114] sm:$0xf] %v1472
    %1539 = vst [vmem:[#allocation3 + $0x138] sm:$0xf] %v1482
    %1540 = vst [vmem:[#allocation3 + $0x15c] sm:$0xf] %v1492
    %1541 = vst [vmem:[#allocation3 + $0x180] sm:$0xf] %v1502
    %1542 = vst [vmem:[#allocation3 + $0x1a4] sm:$0xf] %v1512
    %1543 = vst [vmem:[#allocation3 + $0x1c8] sm:$0x3] %v1517
    %v1544 = vld [vmem:[#allocation2 + $0xc] sm:$0xe]
    %v1545 = vld [vmem:[#allocation2 + $0x10] sm:$0xf]
    %v1546 = vld [vmem:[#allocation2 + $0x14] sm:$0xf]
    %v1547 = vld [vmem:[#allocation2 + $0x18] sm:$0xf]
    %v1548 = vld [vmem:[#allocation2 + $0x1c] sm:$0xf]
    %v1549 = vld [vmem:[#allocation2 + $0x20] sm:$0xf]
    %v1550 = vld [vmem:[#allocation2 + $0x24] sm:$0xf]
    %v1551 = vld [vmem:[#allocation2 + $0x28] sm:$0xf]
    %v1552 = vld [vmem:[#allocation2 + $0x2c] sm:$0xf]
    %v1553 = vld [vmem:[#allocation2 + $0x30] sm:$0xf]
    %v1554 = vld [vmem:[#allocation2 + $0x34] sm:$0xf]
    %v1555 = vld [vmem:[#allocation2 + $0x38] sm:$0xf]
    %v1556 = vld [vmem:[#allocation2 + $0x3c] sm:$0x7]
    %vm1570 = vcmask 1042432
    %vm1571 = vcmask 1046532
    %vm1572 = vmor %vm1570, %vm1571
    %v1573 = vrot.slane %v1544, 5
    %v1574 = vrot.slane %v1573, 4
    %v1575 = vrot.slane %v1545, 5
    %v1576 = vsel %vm1572, %v1574, %v1575
    %v1577 = vrot.slane %v1575, 4
    %v1578 = vrot.slane %v1546, 5
    %v1579 = vsel %vm1572, %v1577, %v1578
    %v1580 = vrot.slane %v1578, 4
    %v1581 = vrot.slane %v1547, 5
    %v1582 = vsel %vm1572, %v1580, %v1581
    %v1583 = vrot.slane %v1581, 4
    %v1584 = vrot.slane %v1548, 5
    %v1585 = vsel %vm1572, %v1583, %v1584
    %v1586 = vrot.slane %v1584, 4
    %v1587 = vrot.slane %v1549, 5
    %v1588 = vsel %vm1572, %v1586, %v1587
    %v1589 = vrot.slane %v1587, 4
    %v1590 = vrot.slane %v1550, 5
    %v1591 = vsel %vm1572, %v1589, %v1590
    %v1592 = vrot.slane %v1590, 4
    %v1593 = vrot.slane %v1551, 5
    %v1594 = vsel %vm1572, %v1592, %v1593
    %v1595 = vrot.slane %v1593, 4
    %v1596 = vrot.slane %v1552, 5
    %v1597 = vsel %vm1572, %v1595, %v1596
    %v1598 = vrot.slane %v1596, 4
    %v1599 = vrot.slane %v1553, 5
    %v1600 = vsel %vm1572, %v1598, %v1599
    %v1601 = vrot.slane %v1599, 4
    %v1602 = vrot.slane %v1554, 5
    %v1603 = vsel %vm1572, %v1601, %v1602
    %v1604 = vrot.slane %v1602, 4
    %v1605 = vrot.slane %v1555, 5
    %v1606 = vsel %vm1572, %v1604, %v1605
    %v1607 = vrot.slane %v1605, 4
    %v1608 = vrot.slane %v1556, 5
    %v1609 = vsel %vm1572, %v1607, %v1608
    %v1610 = vrot.slane %v1608, 4
    %1624 = vst [vmem:[#allocation3 + $0x1c] sm:$0xf] %v1576
    %1625 = vst [vmem:[#allocation3 + $0x40] sm:$0xf] %v1579
    %1626 = vst [vmem:[#allocation3 + $0x64] sm:$0xf] %v1582
    %1627 = vst [vmem:[#allocation3 + $0x88] sm:$0xf] %v1585
    %1628 = vst [vmem:[#allocation3 + $0xac] sm:$0xf] %v1588
    %1629 = vst [vmem:[#allocation3 + $0xd0] sm:$0xf] %v1591
    %1630 = vst [vmem:[#allocation3 + $0xf4] sm:$0xf] %v1594
    %1631 = vst [vmem:[#allocation3 + $0x118] sm:$0xf] %v1597
    %1632 = vst [vmem:[#allocation3 + $0x13c] sm:$0xf] %v1600
    %1633 = vst [vmem:[#allocation3 + $0x160] sm:$0xf] %v1603
    %1634 = vst [vmem:[#allocation3 + $0x184] sm:$0xf] %v1606
    %1635 = vst [vmem:[#allocation3 + $0x1a8] sm:$0xf] %v1609
    %1636 = vst [vmem:[#allocation3 + $0x1cc] sm:$0x3] %v1610
    %v1637 = vld [vmem:[#allocation2 + $0xc] sm:$0xe]
    %v1638 = vld [vmem:[#allocation2 + $0x10] sm:$0xf]
    %v1639 = vld [vmem:[#allocation2 + $0x14] sm:$0xf]
    %v1640 = vld [vmem:[#allocation2 + $0x18] sm:$0xf]
    %v1641 = vld [vmem:[#allocation2 + $0x1c] sm:$0xf]
    %v1642 = vld [vmem:[#allocation2 + $0x20] sm:$0xf]
    %v1643 = vld [vmem:[#allocation2 + $0x24] sm:$0xf]
    %v1644 = vld [vmem:[#allocation2 + $0x28] sm:$0xf]
    %v1645 = vld [vmem:[#allocation2 + $0x2c] sm:$0xf]
    %v1646 = vld [vmem:[#allocation2 + $0x30] sm:$0xf]
    %v1647 = vld [vmem:[#allocation2 + $0x34] sm:$0xf]
    %v1648 = vld [vmem:[#allocation2 + $0x38] sm:$0xf]
    %v1649 = vld [vmem:[#allocation2 + $0x3c] sm:$0xf]
    %vm1650 = vsmask.f32 2304
    %vm1651 = vsmask.f32 6416
    %vm1652 = vmor %vm1650, %vm1651
    %v1654 = vshrl.u32 %v1637, 16
    %v1656 = vrot.slane %v1654, 5
    %v1657 = vshll.u32 %v1637, 16
    %v1659 = vrot.slane %v1657, 6
    %v1660 = vor.u32 %v1656, %v1659
    %v1661 = vrot.slane %v1660, 4
    %v1663 = vshrl.u32 %v1638, 16
    %v1665 = vrot.slane %v1663, 5
    %v1666 = vshll.u32 %v1638, 16
    %v1668 = vrot.slane %v1666, 6
    %v1669 = vor.u32 %v1665, %v1668
    %v1670 = vsel %vm1652, %v1661, %v1669
    %v1671 = vrot.slane %v1669, 4
    %v1673 = vshrl.u32 %v1639, 16
    %v1675 = vrot.slane %v1673, 5
    %v1676 = vshll.u32 %v1639, 16
    %v1678 = vrot.slane %v1676, 6
    %v1679 = vor.u32 %v1675, %v1678
    %v1680 = vsel %vm1652, %v1671, %v1679
    %v1681 = vrot.slane %v1679, 4
    %v1683 = vshrl.u32 %v1640, 16
    %v1685 = vrot.slane %v1683, 5
    %v1686 = vshll.u32 %v1640, 16
    %v1688 = vrot.slane %v1686, 6
    %v1689 = vor.u32 %v1685, %v1688
    %v1690 = vsel %vm1652, %v1681, %v1689
    %v1691 = vrot.slane %v1689, 4
    %v1693 = vshrl.u32 %v1641, 16
    %v1695 = vrot.slane %v1693, 5
    %v1696 = vshll.u32 %v1641, 16
    %v1698 = vrot.slane %v1696, 6
    %v1699 = vor.u32 %v1695, %v1698
    %v1700 = vsel %vm1652, %v1691, %v1699
    %v1701 = vrot.slane %v1699, 4
    %v1703 = vshrl.u32 %v1642, 16
    %v1705 = vrot.slane %v1703, 5
    %v1706 = vshll.u32 %v1642, 16
    %v1708 = vrot.slane %v1706, 6
    %v1709 = vor.u32 %v1705, %v1708
    %v1710 = vsel %vm1652, %v1701, %v1709
    %v1711 = vrot.slane %v1709, 4
    %v1713 = vshrl.u32 %v1643, 16
    %v1715 = vrot.slane %v1713, 5
    %v1716 = vshll.u32 %v1643, 16
    %v1718 = vrot.slane %v1716, 6
    %v1719 = vor.u32 %v1715, %v1718
    %v1720 = vsel %vm1652, %v1711, %v1719
    %v1721 = vrot.slane %v1719, 4
    %v1723 = vshrl.u32 %v1644, 16
    %v1725 = vrot.slane %v1723, 5
    %v1726 = vshll.u32 %v1644, 16
    %v1728 = vrot.slane %v1726, 6
    %v1729 = vor.u32 %v1725, %v1728
    %v1730 = vsel %vm1652, %v1721, %v1729
    %v1731 = vrot.slane %v1729, 4
    %v1733 = vshrl.u32 %v1645, 16
    %v1735 = vrot.slane %v1733, 5
    %v1736 = vshll.u32 %v1645, 16
    %v1738 = vrot.slane %v1736, 6
    %v1739 = vor.u32 %v1735, %v1738
    %v1740 = vsel %vm1652, %v1731, %v1739
    %v1741 = vrot.slane %v1739, 4
    %v1743 = vshrl.u32 %v1646, 16
    %v1745 = vrot.slane %v1743, 5
    %v1746 = vshll.u32 %v1646, 16
    %v1748 = vrot.slane %v1746, 6
    %v1749 = vor.u32 %v1745, %v1748
    %v1750 = vsel %vm1652, %v1741, %v1749
    %v1751 = vrot.slane %v1749, 4
    %v1753 = vshrl.u32 %v1647, 16
    %v1755 = vrot.slane %v1753, 5
    %v1756 = vshll.u32 %v1647, 16
    %v1758 = vrot.slane %v1756, 6
    %v1759 = vor.u32 %v1755, %v1758
    %v1760 = vsel %vm1652, %v1751, %v1759
    %v1761 = vrot.slane %v1759, 4
    %v1763 = vshrl.u32 %v1648, 16
    %v1765 = vrot.slane %v1763, 5
    %v1766 = vshll.u32 %v1648, 16
    %v1768 = vrot.slane %v1766, 6
    %v1769 = vor.u32 %v1765, %v1768
    %v1770 = vsel %vm1652, %v1761, %v1769
    %v1771 = vrot.slane %v1769, 4
    %v1773 = vshrl.u32 %v1649, 16
    %v1775 = vrot.slane %v1773, 5
    %v1776 = vshll.u32 %v1649, 16
    %v1778 = vrot.slane %v1776, 6
    %v1779 = vor.u32 %v1775, %v1778
    %v1780 = vsel %vm1652, %v1771, %v1779
    %v1781 = vrot.slane %v1779, 4
    %1795 = vst [vmem:[#allocation3 + $0x20] sm:$0xf] %v1670
    %1796 = vst [vmem:[#allocation3 + $0x44] sm:$0xf] %v1680
    %1797 = vst [vmem:[#allocation3 + $0x68] sm:$0xf] %v1690
    %1798 = vst [vmem:[#allocation3 + $0x8c] sm:$0xf] %v1700
    %1799 = vst [vmem:[#allocation3 + $0xb0] sm:$0xf] %v1710
    %1800 = vst [vmem:[#allocation3 + $0xd4] sm:$0xf] %v1720
    %1801 = vst [vmem:[#allocation3 + $0xf8] sm:$0xf] %v1730
    %1802 = vst [vmem:[#allocation3 + $0x11c] sm:$0xf] %v1740
    %1803 = vst [vmem:[#allocation3 + $0x140] sm:$0xf] %v1750
    %1804 = vst [vmem:[#allocation3 + $0x164] sm:$0xf] %v1760
    %1805 = vst [vmem:[#allocation3 + $0x188] sm:$0xf] %v1770
    %1806 = vst [vmem:[#allocation3 + $0x1ac] sm:$0xf] %v1780
    %1807 = vst [vmem:[#allocation3 + $0x1d0] sm:$0x3] %v1781
    %v1808 = vld [vmem:[#allocation3] sm:$0xff]
    %v1809 = vld [vmem:[#allocation3 + $0x8] sm:$0xff]
    %v1810 = vld [vmem:[#allocation3 + $0x10] sm:$0xff]
    %v1811 = vld [vmem:[#allocation3 + $0x18] sm:$0xff]
    %v1812 = vld [vmem:[#allocation3 + $0x20] sm:$0xf]
    %v1813 = vld [vmem:[#allocation3 + $0x24] sm:$0xff]
    %v1814 = vld [vmem:[#allocation3 + $0x2c] sm:$0xff]
    %v1815 = vld [vmem:[#allocation3 + $0x34] sm:$0xff]
    %v1816 = vld [vmem:[#allocation3 + $0x3c] sm:$0xff]
    %v1817 = vld [vmem:[#allocation3 + $0x44] sm:$0xf]
    %v1818 = vld [vmem:[#allocation3 + $0x48] sm:$0xff]
    %v1819 = vld [vmem:[#allocation3 + $0x50] sm:$0xff]
    %v1820 = vld [vmem:[#allocation3 + $0x58] sm:$0xff]
    %v1821 = vld [vmem:[#allocation3 + $0x60] sm:$0xff]
    %v1822 = vld [vmem:[#allocation3 + $0x68] sm:$0xf]
    %v1823 = vld [vmem:[#allocation3 + $0x6c] sm:$0xff]
    %v1824 = vld [vmem:[#allocation3 + $0x74] sm:$0xff]
    %v1825 = vld [vmem:[#allocation3 + $0x7c] sm:$0xff]
    %v1826 = vld [vmem:[#allocation3 + $0x84] sm:$0xff]
    %v1827 = vld [vmem:[#allocation3 + $0x8c] sm:$0xf]
    %v1828 = vld [vmem:[#allocation3 + $0x90] sm:$0xff]
    %v1829 = vld [vmem:[#allocation3 + $0x98] sm:$0xff]
    %v1830 = vld [vmem:[#allocation3 + $0xa0] sm:$0xff]
    %v1831 = vld [vmem:[#allocation3 + $0xa8] sm:$0xff]
    %v1832 = vld [vmem:[#allocation3 + $0xb0] sm:$0xf]
    %v1833 = vld [vmem:[#allocation3 + $0xb4] sm:$0xff]
    %v1834 = vld [vmem:[#allocation3 + $0xbc] sm:$0xff]
    %v1835 = vld [vmem:[#allocation3 + $0xc4] sm:$0xff]
    %v1836 = vld [vmem:[#allocation3 + $0xcc] sm:$0xff]
    %v1837 = vld [vmem:[#allocation3 + $0xd4] sm:$0xf]
    %v1838 = vld [vmem:[#allocation3 + $0xd8] sm:$0xff]
    %v1839 = vld [vmem:[#allocation3 + $0xe0] sm:$0xff]
    %v1840 = vld [vmem:[#allocation3 + $0xe8] sm:$0xff]
    %v1841 = vld [vmem:[#allocation3 + $0xf0] sm:$0xff]
    %v1842 = vld [vmem:[#allocation3 + $0xf8] sm:$0xf]
    %v1843 = vld [vmem:[#allocation3 + $0xfc] sm:$0xff]
    %v1844 = vld [vmem:[#allocation3 + $0x104] sm:$0xff]
    %v1845 = vld [vmem:[#allocation3 + $0x10c] sm:$0xff]
    %v1846 = vld [vmem:[#allocation3 + $0x114] sm:$0xff]
    %v1847 = vld [vmem:[#allocation3 + $0x11c] sm:$0xf]
    %v1848 = vld [vmem:[#allocation3 + $0x120] sm:$0xff]
    %v1849 = vld [vmem:[#allocation3 + $0x128] sm:$0xff]
    %v1850 = vld [vmem:[#allocation3 + $0x130] sm:$0xff]
    %v1851 = vld [vmem:[#allocation3 + $0x138] sm:$0xff]
    %v1852 = vld [vmem:[#allocation3 + $0x140] sm:$0xf]
    %v1853 = vld [vmem:[#allocation3 + $0x144] sm:$0xff]
    %v1854 = vld [vmem:[#allocation3 + $0x14c] sm:$0xff]
    %v1855 = vld [vmem:[#allocation3 + $0x154] sm:$0xff]
    %v1856 = vld [vmem:[#allocation3 + $0x15c] sm:$0xff]
    %v1857 = vld [vmem:[#allocation3 + $0x164] sm:$0xf]
    %v1858 = vld [vmem:[#allocation3 + $0x168] sm:$0xff]
    %v1859 = vld [vmem:[#allocation3 + $0x170] sm:$0xff]
    %v1860 = vld [vmem:[#allocation3 + $0x178] sm:$0xff]
    %v1861 = vld [vmem:[#allocation3 + $0x180] sm:$0xff]
    %v1862 = vld [vmem:[#allocation3 + $0x188] sm:$0xf]
    %v1863 = vld [vmem:[#allocation3 + $0x18c] sm:$0xff]
    %v1864 = vld [vmem:[#allocation3 + $0x194] sm:$0xff]
    %v1865 = vld [vmem:[#allocation3 + $0x19c] sm:$0xff]
    %v1866 = vld [vmem:[#allocation3 + $0x1a4] sm:$0xff]
    %v1867 = vld [vmem:[#allocation3 + $0x1ac] sm:$0xf]
    %v1868 = vld [vmem:[#allocation3 + $0x1b0] sm:$0x33]
    %v1869 = vld [vmem:[#allocation3 + $0x1b8] sm:$0x33]
    %v1870 = vld [vmem:[#allocation3 + $0x1c0] sm:$0x33]
    %v1871 = vld [vmem:[#allocation3 + $0x1c8] sm:$0x33]
    %v1872 = vld [vmem:[#allocation3 + $0x1d0] sm:$0x3]
    %v1873 = vld [vmem:[#allocation4] sm:$0xf]
    %v1874 = vld [vmem:[#allocation4 + $0x4] sm:$0xf]
    %v1875 = vld [vmem:[#allocation4 + $0x8] sm:$0xf]
    %v1876 = vld [vmem:[#allocation4 + $0xc] sm:$0xf]
    %v1877 = vld [vmem:[#allocation4 + $0x10] sm:$0xf]
    %v1878 = vld [vmem:[#allocation4 + $0x14] sm:$0xf]
    %v1879 = vld [vmem:[#allocation4 + $0x18] sm:$0xf]
    %v1880 = vld [vmem:[#allocation4 + $0x1c] sm:$0xf]
    %v1881 = vld [vmem:[#allocation4 + $0x20] sm:$0xf]
    %v1882 = vld [vmem:[#allocation4 + $0x24] sm:$0xf]
    %v1883 = vld [vmem:[#allocation4 + $0x28] sm:$0xf]
    %v1884 = vld [vmem:[#allocation4 + $0x2c] sm:$0xf]
    %v1885 = vld [vmem:[#allocation4 + $0x30] sm:$0xf]
    %v1886 = vld [vmem:[#allocation4 + $0x34] sm:$0xf]
    %v1887 = vld [vmem:[#allocation4 + $0x38] sm:$0xf]
    %v1888 = vld [vmem:[#allocation4 + $0x3c] sm:$0xf]
    %v1889 = vld [vmem:[#allocation4 + $0x40] sm:$0xf]
    %v1890 = vld [vmem:[#allocation4 + $0x44] sm:$0xf]
    %v1891 = vld [vmem:[#allocation4 + $0x48] sm:$0xf]
    %v1892 = vld [vmem:[#allocation4 + $0x4c] sm:$0xf]
    %v1893 = vld [vmem:[#allocation4 + $0x50] sm:$0xf]
    %v1894 = vld [vmem:[#allocation4 + $0x54] sm:$0xf]
    %v1895 = vld [vmem:[#allocation4 + $0x58] sm:$0xf]
    %v1896 = vld [vmem:[#allocation4 + $0x5c] sm:$0xf]
    %v1897 = vld [vmem:[#allocation4 + $0x60] sm:$0xf]
    %v1898 = vld [vmem:[#allocation4 + $0x64] sm:$0xf]
    %v1899 = vld [vmem:[#allocation4 + $0x68] sm:$0xf]
    %v1900 = vld [vmem:[#allocation4 + $0x6c] sm:$0xf]
    %v1901 = vld [vmem:[#allocation4 + $0x70] sm:$0xf]
    %v1902 = vld [vmem:[#allocation4 + $0x74] sm:$0xf]
    %v1903 = vld [vmem:[#allocation4 + $0x78] sm:$0xf]
    %v1904 = vld [vmem:[#allocation4 + $0x7c] sm:$0xf]
    %v1905 = vld [vmem:[#allocation4 + $0x80] sm:$0xf]
    %v1906 = vld [vmem:[#allocation4 + $0x84] sm:$0xf]
    %v1907 = vld [vmem:[#allocation4 + $0x88] sm:$0xf]
    %v1908 = vld [vmem:[#allocation4 + $0x8c] sm:$0xf]
    %v1909 = vld [vmem:[#allocation4 + $0x90] sm:$0xf]
    %v1910 = vld [vmem:[#allocation4 + $0x94] sm:$0xf]
    %v1911 = vld [vmem:[#allocation4 + $0x98] sm:$0xf]
    %v1912 = vld [vmem:[#allocation4 + $0x9c] sm:$0xf]
    %v1913 = vld [vmem:[#allocation4 + $0xa0] sm:$0xf]
    %v1914 = vld [vmem:[#allocation4 + $0xa4] sm:$0xf]
    %v1915 = vld [vmem:[#allocation4 + $0xa8] sm:$0xf]
    %v1916 = vld [vmem:[#allocation4 + $0xac] sm:$0xf]
    %v1917 = vld [vmem:[#allocation4 + $0xb0] sm:$0xf]
    %v1918 = vld [vmem:[#allocation4 + $0xb4] sm:$0xf]
    %v1919 = vld [vmem:[#allocation4 + $0xb8] sm:$0xf]
    %v1920 = vld [vmem:[#allocation4 + $0xbc] sm:$0xf]
    %v1921 = vld [vmem:[#allocation4 + $0xc0] sm:$0xf]
    %v1922 = vld [vmem:[#allocation4 + $0xc4] sm:$0xf]
    %v1923 = vld [vmem:[#allocation4 + $0xc8] sm:$0xf]
    %v1924 = vld [vmem:[#allocation4 + $0xcc] sm:$0xf]
    %v1925 = vld [vmem:[#allocation4 + $0xd0] sm:$0xf]
    %v1926 = vld [vmem:[#allocation4 + $0xd4] sm:$0xf]
    %v1927 = vld [vmem:[#allocation4 + $0xd8] sm:$0xf]
    %v1928 = vld [vmem:[#allocation4 + $0xdc] sm:$0xf]
    %v1929 = vld [vmem:[#allocation4 + $0xe0] sm:$0xf]
    %v1930 = vld [vmem:[#allocation4 + $0xe4] sm:$0xf]
    %v1931 = vld [vmem:[#allocation4 + $0xe8] sm:$0xf]
    %v1932 = vld [vmem:[#allocation4 + $0xec] sm:$0xf]
    %v1933 = vld [vmem:[#allocation4 + $0xf0] sm:$0xf]
    %v1934 = vld [vmem:[#allocation4 + $0xf4] sm:$0xf]
    %v1935 = vld [vmem:[#allocation4 + $0xf8] sm:$0xf]
    %v1936 = vld [vmem:[#allocation4 + $0xfc] sm:$0xf]
    %v1937 = vld [vmem:[#allocation4 + $0x100] sm:$0xf]
    %v1938 = vld [vmem:[#allocation4 + $0x104] sm:$0xf]
    %v1939 = vld [vmem:[#allocation4 + $0x108] sm:$0xf]
    %v1940 = vld [vmem:[#allocation4 + $0x10c] sm:$0xf]
    %v1941 = vld [vmem:[#allocation4 + $0x110] sm:$0xf]
    %v1942 = vld [vmem:[#allocation4 + $0x114] sm:$0xf]
    %v1943 = vld [vmem:[#allocation4 + $0x118] sm:$0xf]
    %v1944 = vld [vmem:[#allocation4 + $0x11c] sm:$0xf]
    %v1945 = vld [vmem:[#allocation4 + $0x120] sm:$0xf]
    %v1946 = vld [vmem:[#allocation4 + $0x124] sm:$0xf]
    %v1947 = vld [vmem:[#allocation4 + $0x128] sm:$0xf]
    %v1948 = vld [vmem:[#allocation4 + $0x12c] sm:$0xf]
    %v1949 = vld [vmem:[#allocation4 + $0x130] sm:$0xf]
    %v1950 = vld [vmem:[#allocation4 + $0x134] sm:$0xf]
    %v1951 = vld [vmem:[#allocation4 + $0x138] sm:$0xf]
    %v1952 = vld [vmem:[#allocation4 + $0x13c] sm:$0xf]
    %v1953 = vld [vmem:[#allocation4 + $0x140] sm:$0xf]
    %v1954 = vld [vmem:[#allocation4 + $0x144] sm:$0xf]
    %v1955 = vld [vmem:[#allocation4 + $0x148] sm:$0xf]
    %v1956 = vld [vmem:[#allocation4 + $0x14c] sm:$0xf]
    %v1957 = vld [vmem:[#allocation4 + $0x150] sm:$0xf]
    %v1958 = vld [vmem:[#allocation4 + $0x154] sm:$0xf]
    %v1959 = vld [vmem:[#allocation4 + $0x158] sm:$0xf]
    %v1960 = vld [vmem:[#allocation4 + $0x15c] sm:$0xf]
    %v1961 = vld [vmem:[#allocation4 + $0x160] sm:$0xf]
    %v1962 = vld [vmem:[#allocation4 + $0x164] sm:$0xf]
    %v1963 = vld [vmem:[#allocation4 + $0x168] sm:$0xf]
    %v1964 = vld [vmem:[#allocation4 + $0x16c] sm:$0xf]
    %v1965 = vld [vmem:[#allocation4 + $0x170] sm:$0xf]
    %v1966 = vld [vmem:[#allocation4 + $0x174] sm:$0xf]
    %v1967 = vld [vmem:[#allocation4 + $0x178] sm:$0xf]
    %v1968 = vld [vmem:[#allocation4 + $0x17c] sm:$0xf]
    %v1969 = vld [vmem:[#allocation4 + $0x180] sm:$0xf]
    %v1970 = vld [vmem:[#allocation4 + $0x184] sm:$0xf]
    %v1971 = vld [vmem:[#allocation4 + $0x188] sm:$0xf]
    %v1972 = vld [vmem:[#allocation4 + $0x18c] sm:$0xf]
    %v1973 = vld [vmem:[#allocation4 + $0x190] sm:$0xf]
    %v1974 = vld [vmem:[#allocation4 + $0x194] sm:$0xf]
    %v1975 = vld [vmem:[#allocation4 + $0x198] sm:$0xf]
    %v1976 = vld [vmem:[#allocation4 + $0x19c] sm:$0xf]
    %v1977 = vld [vmem:[#allocation4 + $0x1a0] sm:$0xf]
    %v1978 = vld [vmem:[#allocation4 + $0x1a4] sm:$0xf]
    %v1979 = vld [vmem:[#allocation4 + $0x1a8] sm:$0xf]
    %v1980 = vld [vmem:[#allocation4 + $0x1ac] sm:$0xf]
    %v1981 = vld [vmem:[#allocation4 + $0x1b0] sm:$0xf]
    %v1982 = vld [vmem:[#allocation4 + $0x1b4] sm:$0xf]
    %v1983 = vld [vmem:[#allocation4 + $0x1b8] sm:$0xf]
    %v1984 = vld [vmem:[#allocation4 + $0x1bc] sm:$0xf]
    %v1985 = vld [vmem:[#allocation4 + $0x1c0] sm:$0xf]
    %v1986 = vld [vmem:[#allocation4 + $0x1c4] sm:$0xf]
    %v1987 = vld [vmem:[#allocation4 + $0x1c8] sm:$0xf]
    %v1988 = vld [vmem:[#allocation4 + $0x1cc] sm:$0xf]
    %v1989 = vld [vmem:[#allocation4 + $0x1d0] sm:$0xf]
    %v1990 = vld [vmem:[#allocation4 + $0x1d4] sm:$0xf]
    %v1991 = vld [vmem:[#allocation4 + $0x1d8] sm:$0xf]
    %v1992 = vld [vmem:[#allocation4 + $0x1dc] sm:$0xf]
    %v1993 = vld [vmem:[#allocation4 + $0x1e0] sm:$0xf]
    %v1994 = vld [vmem:[#allocation4 + $0x1e4] sm:$0xf]
    %v1995 = vld [vmem:[#allocation4 + $0x1e8] sm:$0xf]
    %v1996 = vld [vmem:[#allocation4 + $0x1ec] sm:$0xf]
    %v1997 = vld [vmem:[#allocation4 + $0x1f0] sm:$0xf]
    %v1998 = vld [vmem:[#allocation4 + $0x1f4] sm:$0xf]
    %v1999 = vld [vmem:[#allocation4 + $0x1f8] sm:$0xf]
    %v2000 = vld [vmem:[#allocation4 + $0x1fc] sm:$0xf]
    %v2001 = vld [vmem:[#allocation4 + $0x200] sm:$0xf]
    %v2002 = vld [vmem:[#allocation4 + $0x204] sm:$0xf]
    %v2003 = vld [vmem:[#allocation4 + $0x208] sm:$0xf]
    %v2004 = vld [vmem:[#allocation4 + $0x20c] sm:$0xf]
    %v2005 = vld [vmem:[#allocation4 + $0x210] sm:$0xf]
    %v2006 = vld [vmem:[#allocation4 + $0x214] sm:$0xf]
    %v2007 = vld [vmem:[#allocation4 + $0x218] sm:$0xf]
    %v2008 = vld [vmem:[#allocation4 + $0x21c] sm:$0xf]
    %v2009 = vld [vmem:[#allocation4 + $0x220] sm:$0xf]
    %v2010 = vld [vmem:[#allocation4 + $0x224] sm:$0xf]
    %v2011 = vld [vmem:[#allocation4 + $0x228] sm:$0xf]
    %v2012 = vld [vmem:[#allocation4 + $0x22c] sm:$0xf]
    %v2013 = vld [vmem:[#allocation4 + $0x230] sm:$0xf]
    %v2014 = vld [vmem:[#allocation4 + $0x234] sm:$0xf]
    %v2015 = vld [vmem:[#allocation4 + $0x238] sm:$0xf]
    %v2016 = vld [vmem:[#allocation4 + $0x23c] sm:$0xf]
    %v2082 = vunpack.c.l.b16 %v1808
    %v2083 = vunpack.c.h.b16 %v1808
    %v2084 = vunpack.c.l.b16 %v1809
    %v2085 = vunpack.c.h.b16 %v1809
    %v2086 = vunpack.c.l.b16 %v1810
    %v2087 = vunpack.c.h.b16 %v1810
    %v2088 = vunpack.c.l.b16 %v1811
    %v2089 = vunpack.c.h.b16 %v1811
    %v2090 = vunpack.c.l.b16 %v1812
    %v2091 = vunpack.c.l.b16 %v1813
    %v2092 = vunpack.c.h.b16 %v1813
    %v2093 = vunpack.c.l.b16 %v1814
    %v2094 = vunpack.c.h.b16 %v1814
    %v2095 = vunpack.c.l.b16 %v1815
    %v2096 = vunpack.c.h.b16 %v1815
    %v2097 = vunpack.c.l.b16 %v1816
    %v2098 = vunpack.c.h.b16 %v1816
    %v2099 = vunpack.c.l.b16 %v1817
    %v2100 = vunpack.c.l.b16 %v1818
    %v2101 = vunpack.c.h.b16 %v1818
    %v2102 = vunpack.c.l.b16 %v1819
    %v2103 = vunpack.c.h.b16 %v1819
    %v2104 = vunpack.c.l.b16 %v1820
    %v2105 = vunpack.c.h.b16 %v1820
    %v2106 = vunpack.c.l.b16 %v1821
    %v2107 = vunpack.c.h.b16 %v1821
    %v2108 = vunpack.c.l.b16 %v1822
    %v2109 = vunpack.c.l.b16 %v1823
    %v2110 = vunpack.c.h.b16 %v1823
    %v2111 = vunpack.c.l.b16 %v1824
    %v2112 = vunpack.c.h.b16 %v1824
    %v2113 = vunpack.c.l.b16 %v1825
    %v2114 = vunpack.c.h.b16 %v1825
    %v2115 = vunpack.c.l.b16 %v1826
    %v2116 = vunpack.c.h.b16 %v1826
    %v2117 = vunpack.c.l.b16 %v1827
    %v2118 = vunpack.c.l.b16 %v1828
    %v2119 = vunpack.c.h.b16 %v1828
    %v2120 = vunpack.c.l.b16 %v1829
    %v2121 = vunpack.c.h.b16 %v1829
    %v2122 = vunpack.c.l.b16 %v1830
    %v2123 = vunpack.c.h.b16 %v1830
    %v2124 = vunpack.c.l.b16 %v1831
    %v2125 = vunpack.c.h.b16 %v1831
    %v2126 = vunpack.c.l.b16 %v1832
    %v2127 = vunpack.c.l.b16 %v1833
    %v2128 = vunpack.c.h.b16 %v1833
    %v2129 = vunpack.c.l.b16 %v1834
    %v2130 = vunpack.c.h.b16 %v1834
    %v2131 = vunpack.c.l.b16 %v1835
    %v2132 = vunpack.c.h.b16 %v1835
    %v2133 = vunpack.c.l.b16 %v1836
    %v2134 = vunpack.c.h.b16 %v1836
    %v2135 = vunpack.c.l.b16 %v1837
    %v2136 = vunpack.c.l.b16 %v1838
    %v2137 = vunpack.c.h.b16 %v1838
    %v2138 = vunpack.c.l.b16 %v1839
    %v2139 = vunpack.c.h.b16 %v1839
    %v2140 = vunpack.c.l.b16 %v1840
    %v2141 = vunpack.c.h.b16 %v1840
    %v2142 = vunpack.c.l.b16 %v1841
    %v2143 = vunpack.c.h.b16 %v1841
    %v2144 = vunpack.c.l.b16 %v1842
    %v2145 = vunpack.c.l.b16 %v1843
    %v2146 = vunpack.c.h.b16 %v1843
    %v2147 = vunpack.c.l.b16 %v1844
    %v2148 = vunpack.c.h.b16 %v1844
    %v2149 = vunpack.c.l.b16 %v1845
    %v2150 = vunpack.c.h.b16 %v1845
    %v2151 = vunpack.c.l.b16 %v1846
    %v2152 = vunpack.c.h.b16 %v1846
    %v2153 = vunpack.c.l.b16 %v1847
    %v2154 = vunpack.c.l.b16 %v1848
    %v2155 = vunpack.c.h.b16 %v1848
    %v2156 = vunpack.c.l.b16 %v1849
    %v2157 = vunpack.c.h.b16 %v1849
    %v2158 = vunpack.c.l.b16 %v1850
    %v2159 = vunpack.c.h.b16 %v1850
    %v2160 = vunpack.c.l.b16 %v1851
    %v2161 = vunpack.c.h.b16 %v1851
    %v2162 = vunpack.c.l.b16 %v1852
    %v2163 = vunpack.c.l.b16 %v1853
    %v2164 = vunpack.c.h.b16 %v1853
    %v2165 = vunpack.c.l.b16 %v1854
    %v2166 = vunpack.c.h.b16 %v1854
    %v2167 = vunpack.c.l.b16 %v1855
    %v2168 = vunpack.c.h.b16 %v1855
    %v2169 = vunpack.c.l.b16 %v1856
    %v2170 = vunpack.c.h.b16 %v1856
    %v2171 = vunpack.c.l.b16 %v1857
    %v2172 = vunpack.c.l.b16 %v1858
    %v2173 = vunpack.c.h.b16 %v1858
    %v2174 = vunpack.c.l.b16 %v1859
    %v2175 = vunpack.c.h.b16 %v1859
    %v2176 = vunpack.c.l.b16 %v1860
    %v2177 = vunpack.c.h.b16 %v1860
    %v2178 = vunpack.c.l.b16 %v1861
    %v2179 = vunpack.c.h.b16 %v1861
    %v2180 = vunpack.c.l.b16 %v1862
    %v2181 = vunpack.c.l.b16 %v1863
    %v2182 = vunpack.c.h.b16 %v1863
    %v2183 = vunpack.c.l.b16 %v1864
    %v2184 = vunpack.c.h.b16 %v1864
    %v2185 = vunpack.c.l.b16 %v1865
    %v2186 = vunpack.c.h.b16 %v1865
    %v2187 = vunpack.c.l.b16 %v1866
    %v2188 = vunpack.c.h.b16 %v1866
    %v2189 = vunpack.c.l.b16 %v1867
    %v2190 = vunpack.c.l.b16 %v1868
    %v2191 = vunpack.c.h.b16 %v1868
    %v2192 = vunpack.c.l.b16 %v1869
    %v2193 = vunpack.c.h.b16 %v1869
    %v2194 = vunpack.c.l.b16 %v1870
    %v2195 = vunpack.c.h.b16 %v1870
    %v2196 = vunpack.c.l.b16 %v1871
    %v2197 = vunpack.c.h.b16 %v1871
    %v2198 = vunpack.c.l.b16 %v1872
    %v2199 = vpack.c.b16 %v2091, %v2082
    %v2200 = vpack.c.b16 %v2092, %v2083
    %v2201 = vpack.c.b16 %v2093, %v2084
    %v2202 = vpack.c.b16 %v2094, %v2085
    %v2203 = vpack.c.b16 %v2095, %v2086
    %v2204 = vpack.c.b16 %v2096, %v2087
    %v2205 = vpack.c.b16 %v2097, %v2088
    %v2206 = vpack.c.b16 %v2098, %v2089
    %v2207 = vpack.c.b16 %v2099, %v2090
    %v2208 = vpack.c.b16 %v2109, %v2100
    %v2209 = vpack.c.b16 %v2110, %v2101
    %v2210 = vpack.c.b16 %v2111, %v2102
    %v2211 = vpack.c.b16 %v2112, %v2103
    %v2212 = vpack.c.b16 %v2113, %v2104
    %v2213 = vpack.c.b16 %v2114, %v2105
    %v2214 = vpack.c.b16 %v2115, %v2106
    %v2215 = vpack.c.b16 %v2116, %v2107
    %v2216 = vpack.c.b16 %v2117, %v2108
    %v2217 = vpack.c.b16 %v2127, %v2118
    %v2218 = vpack.c.b16 %v2128, %v2119
    %v2219 = vpack.c.b16 %v2129, %v2120
    %v2220 = vpack.c.b16 %v2130, %v2121
    %v2221 = vpack.c.b16 %v2131, %v2122
    %v2222 = vpack.c.b16 %v2132, %v2123
    %v2223 = vpack.c.b16 %v2133, %v2124
    %v2224 = vpack.c.b16 %v2134, %v2125
    %v2225 = vpack.c.b16 %v2135, %v2126
    %v2226 = vpack.c.b16 %v2145, %v2136
    %v2227 = vpack.c.b16 %v2146, %v2137
    %v2228 = vpack.c.b16 %v2147, %v2138
    %v2229 = vpack.c.b16 %v2148, %v2139
    %v2230 = vpack.c.b16 %v2149, %v2140
    %v2231 = vpack.c.b16 %v2150, %v2141
    %v2232 = vpack.c.b16 %v2151, %v2142
    %v2233 = vpack.c.b16 %v2152, %v2143
    %v2234 = vpack.c.b16 %v2153, %v2144
    %v2235 = vpack.c.b16 %v2163, %v2154
    %v2236 = vpack.c.b16 %v2164, %v2155
    %v2237 = vpack.c.b16 %v2165, %v2156
    %v2238 = vpack.c.b16 %v2166, %v2157
    %v2239 = vpack.c.b16 %v2167, %v2158
    %v2240 = vpack.c.b16 %v2168, %v2159
    %v2241 = vpack.c.b16 %v2169, %v2160
    %v2242 = vpack.c.b16 %v2170, %v2161
    %v2243 = vpack.c.b16 %v2171, %v2162
    %v2244 = vpack.c.b16 %v2181, %v2172
    %v2245 = vpack.c.b16 %v2182, %v2173
    %v2246 = vpack.c.b16 %v2183, %v2174
    %v2247 = vpack.c.b16 %v2184, %v2175
    %v2248 = vpack.c.b16 %v2185, %v2176
    %v2249 = vpack.c.b16 %v2186, %v2177
    %v2250 = vpack.c.b16 %v2187, %v2178
    %v2251 = vpack.c.b16 %v2188, %v2179
    %v2252 = vpack.c.b16 %v2189, %v2180
    %v2253 = vpack.c.b16 %v2190, %v2190
    %v2254 = vpack.c.b16 %v2191, %v2191
    %v2255 = vpack.c.b16 %v2192, %v2192
    %v2256 = vpack.c.b16 %v2193, %v2193
    %v2257 = vpack.c.b16 %v2194, %v2194
    %v2258 = vpack.c.b16 %v2195, %v2195
    %v2259 = vpack.c.b16 %v2196, %v2196
    %v2260 = vpack.c.b16 %v2197, %v2197
    %v2261 = vpack.c.b16 %v2198, %v2198
    %v2469 = vunpack.c.l.b16 %v1873
    %v2470 = vunpack.c.l.b16 %v1874
    %v2471 = vunpack.c.l.b16 %v1875
    %v2472 = vunpack.c.l.b16 %v1876
    %v2473 = vunpack.c.l.b16 %v1877
    %v2474 = vunpack.c.l.b16 %v1878
    %v2475 = vunpack.c.l.b16 %v1879
    %v2476 = vunpack.c.l.b16 %v1880
    %v2477 = vunpack.c.l.b16 %v1881
    %v2478 = vunpack.c.l.b16 %v1882
    %v2479 = vunpack.c.l.b16 %v1883
    %v2480 = vunpack.c.l.b16 %v1884
    %v2481 = vunpack.c.l.b16 %v1885
    %v2482 = vunpack.c.l.b16 %v1886
    %v2483 = vunpack.c.l.b16 %v1887
    %v2484 = vunpack.c.l.b16 %v1888
    %v2485 = vunpack.c.l.b16 %v1889
    %v2486 = vunpack.c.l.b16 %v1890
    %v2487 = vunpack.c.l.b16 %v1891
    %v2488 = vunpack.c.l.b16 %v1892
    %v2489 = vunpack.c.l.b16 %v1893
    %v2490 = vunpack.c.l.b16 %v1894
    %v2491 = vunpack.c.l.b16 %v1895
    %v2492 = vunpack.c.l.b16 %v1896
    %v2493 = vunpack.c.l.b16 %v1897
    %v2494 = vunpack.c.l.b16 %v1898
    %v2495 = vunpack.c.l.b16 %v1899
    %v2496 = vunpack.c.l.b16 %v1900
    %v2497 = vunpack.c.l.b16 %v1901
    %v2498 = vunpack.c.l.b16 %v1902
    %v2499 = vunpack.c.l.b16 %v1903
    %v2500 = vunpack.c.l.b16 %v1904
    %v2501 = vunpack.c.l.b16 %v1905
    %v2502 = vunpack.c.l.b16 %v1906
    %v2503 = vunpack.c.l.b16 %v1907
    %v2504 = vunpack.c.l.b16 %v1908
    %v2505 = vunpack.c.l.b16 %v1909
    %v2506 = vunpack.c.l.b16 %v1910
    %v2507 = vunpack.c.l.b16 %v1911
    %v2508 = vunpack.c.l.b16 %v1912
    %v2509 = vunpack.c.l.b16 %v1913
    %v2510 = vunpack.c.l.b16 %v1914
    %v2511 = vunpack.c.l.b16 %v1915
    %v2512 = vunpack.c.l.b16 %v1916
    %v2513 = vunpack.c.l.b16 %v1917
    %v2514 = vunpack.c.l.b16 %v1918
    %v2515 = vunpack.c.l.b16 %v1919
    %v2516 = vunpack.c.l.b16 %v1920
    %v2517 = vunpack.c.l.b16 %v1921
    %v2518 = vunpack.c.l.b16 %v1922
    %v2519 = vunpack.c.l.b16 %v1923
    %v2520 = vunpack.c.l.b16 %v1924
    %v2521 = vunpack.c.l.b16 %v1925
    %v2522 = vunpack.c.l.b16 %v1926
    %v2523 = vunpack.c.l.b16 %v1927
    %v2524 = vunpack.c.l.b16 %v1928
    %v2525 = vunpack.c.l.b16 %v1929
    %v2526 = vunpack.c.l.b16 %v1930
    %v2527 = vunpack.c.l.b16 %v1931
    %v2528 = vunpack.c.l.b16 %v1932
    %v2529 = vunpack.c.l.b16 %v1933
    %v2530 = vunpack.c.l.b16 %v1934
    %v2531 = vunpack.c.l.b16 %v1935
    %v2532 = vunpack.c.l.b16 %v1936
    %v2533 = vunpack.c.l.b16 %v1937
    %v2534 = vunpack.c.l.b16 %v1938
    %v2535 = vunpack.c.l.b16 %v1939
    %v2536 = vunpack.c.l.b16 %v1940
    %v2537 = vunpack.c.l.b16 %v1941
    %v2538 = vunpack.c.l.b16 %v1942
    %v2539 = vunpack.c.l.b16 %v1943
    %v2540 = vunpack.c.l.b16 %v1944
    %v2541 = vunpack.c.l.b16 %v1945
    %v2542 = vunpack.c.l.b16 %v1946
    %v2543 = vunpack.c.l.b16 %v1947
    %v2544 = vunpack.c.l.b16 %v1948
    %v2545 = vunpack.c.l.b16 %v1949
    %v2546 = vunpack.c.l.b16 %v1950
    %v2547 = vunpack.c.l.b16 %v1951
    %v2548 = vunpack.c.l.b16 %v1952
    %v2549 = vunpack.c.l.b16 %v1953
    %v2550 = vunpack.c.l.b16 %v1954
    %v2551 = vunpack.c.l.b16 %v1955
    %v2552 = vunpack.c.l.b16 %v1956
    %v2553 = vunpack.c.l.b16 %v1957
    %v2554 = vunpack.c.l.b16 %v1958
    %v2555 = vunpack.c.l.b16 %v1959
    %v2556 = vunpack.c.l.b16 %v1960
    %v2557 = vunpack.c.l.b16 %v1961
    %v2558 = vunpack.c.l.b16 %v1962
    %v2559 = vunpack.c.l.b16 %v1963
    %v2560 = vunpack.c.l.b16 %v1964
    %v2561 = vunpack.c.l.b16 %v1965
    %v2562 = vunpack.c.l.b16 %v1966
    %v2563 = vunpack.c.l.b16 %v1967
    %v2564 = vunpack.c.l.b16 %v1968
    %v2565 = vunpack.c.l.b16 %v1969
    %v2566 = vunpack.c.l.b16 %v1970
    %v2567 = vunpack.c.l.b16 %v1971
    %v2568 = vunpack.c.l.b16 %v1972
    %v2569 = vunpack.c.l.b16 %v1973
    %v2570 = vunpack.c.l.b16 %v1974
    %v2571 = vunpack.c.l.b16 %v1975
    %v2572 = vunpack.c.l.b16 %v1976
    %v2573 = vunpack.c.l.b16 %v1977
    %v2574 = vunpack.c.l.b16 %v1978
    %v2575 = vunpack.c.l.b16 %v1979
    %v2576 = vunpack.c.l.b16 %v1980
    %v2577 = vunpack.c.l.b16 %v1981
    %v2578 = vunpack.c.l.b16 %v1982
    %v2579 = vunpack.c.l.b16 %v1983
    %v2580 = vunpack.c.l.b16 %v1984
    %v2581 = vunpack.c.l.b16 %v1985
    %v2582 = vunpack.c.l.b16 %v1986
    %v2583 = vunpack.c.l.b16 %v1987
    %v2584 = vunpack.c.l.b16 %v1988
    %v2585 = vunpack.c.l.b16 %v1989
    %v2586 = vunpack.c.l.b16 %v1990
    %v2587 = vunpack.c.l.b16 %v1991
    %v2588 = vunpack.c.l.b16 %v1992
    %v2589 = vunpack.c.l.b16 %v1993
    %v2590 = vunpack.c.l.b16 %v1994
    %v2591 = vunpack.c.l.b16 %v1995
    %v2592 = vunpack.c.l.b16 %v1996
    %v2593 = vunpack.c.l.b16 %v1997
    %v2594 = vunpack.c.l.b16 %v1998
    %v2595 = vunpack.c.l.b16 %v1999
    %v2596 = vunpack.c.l.b16 %v2000
    %v2597 = vunpack.c.l.b16 %v2001
    %v2598 = vunpack.c.l.b16 %v2002
    %v2599 = vunpack.c.l.b16 %v2003
    %v2600 = vunpack.c.l.b16 %v2004
    %v2601 = vunpack.c.l.b16 %v2005
    %v2602 = vunpack.c.l.b16 %v2006
    %v2603 = vunpack.c.l.b16 %v2007
    %v2604 = vunpack.c.l.b16 %v2008
    %v2605 = vunpack.c.l.b16 %v2009
    %v2606 = vunpack.c.l.b16 %v2010
    %v2607 = vunpack.c.l.b16 %v2011
    %v2608 = vunpack.c.l.b16 %v2012
    %v2609 = vunpack.c.l.b16 %v2013
    %v2610 = vunpack.c.l.b16 %v2014
    %v2611 = vunpack.c.l.b16 %v2015
    %v2612 = vunpack.c.l.b16 %v2016
    %v2613 = vpack.c.b16 %v2470, %v2469
    %v2614 = vpack.c.b16 %v2472, %v2471
    %v2615 = vpack.c.b16 %v2474, %v2473
    %v2616 = vpack.c.b16 %v2476, %v2475
    %v2617 = vpack.c.b16 %v2478, %v2477
    %v2618 = vpack.c.b16 %v2480, %v2479
    %v2619 = vpack.c.b16 %v2482, %v2481
    %v2620 = vpack.c.b16 %v2484, %v2483
    %v2621 = vpack.c.b16 %v2486, %v2485
    %v2622 = vpack.c.b16 %v2488, %v2487
    %v2623 = vpack.c.b16 %v2490, %v2489
    %v2624 = vpack.c.b16 %v2492, %v2491
    %v2625 = vpack.c.b16 %v2494, %v2493
    %v2626 = vpack.c.b16 %v2496, %v2495
    %v2627 = vpack.c.b16 %v2498, %v2497
    %v2628 = vpack.c.b16 %v2500, %v2499
    %v2629 = vpack.c.b16 %v2502, %v2501
    %v2630 = vpack.c.b16 %v2504, %v2503
    %v2631 = vpack.c.b16 %v2506, %v2505
    %v2632 = vpack.c.b16 %v2508, %v2507
    %v2633 = vpack.c.b16 %v2510, %v2509
    %v2634 = vpack.c.b16 %v2512, %v2511
    %v2635 = vpack.c.b16 %v2514, %v2513
    %v2636 = vpack.c.b16 %v2516, %v2515
    %v2637 = vpack.c.b16 %v2518, %v2517
    %v2638 = vpack.c.b16 %v2520, %v2519
    %v2639 = vpack.c.b16 %v2522, %v2521
    %v2640 = vpack.c.b16 %v2524, %v2523
    %v2641 = vpack.c.b16 %v2526, %v2525
    %v2642 = vpack.c.b16 %v2528, %v2527
    %v2643 = vpack.c.b16 %v2530, %v2529
    %v2644 = vpack.c.b16 %v2532, %v2531
    %v2645 = vpack.c.b16 %v2534, %v2533
    %v2646 = vpack.c.b16 %v2536, %v2535
    %v2647 = vpack.c.b16 %v2538, %v2537
    %v2648 = vpack.c.b16 %v2540, %v2539
    %v2649 = vpack.c.b16 %v2542, %v2541
    %v2650 = vpack.c.b16 %v2544, %v2543
    %v2651 = vpack.c.b16 %v2546, %v2545
    %v2652 = vpack.c.b16 %v2548, %v2547
    %v2653 = vpack.c.b16 %v2550, %v2549
    %v2654 = vpack.c.b16 %v2552, %v2551
    %v2655 = vpack.c.b16 %v2554, %v2553
    %v2656 = vpack.c.b16 %v2556, %v2555
    %v2657 = vpack.c.b16 %v2558, %v2557
    %v2658 = vpack.c.b16 %v2560, %v2559
    %v2659 = vpack.c.b16 %v2562, %v2561
    %v2660 = vpack.c.b16 %v2564, %v2563
    %v2661 = vpack.c.b16 %v2566, %v2565
    %v2662 = vpack.c.b16 %v2568, %v2567
    %v2663 = vpack.c.b16 %v2570, %v2569
    %v2664 = vpack.c.b16 %v2572, %v2571
    %v2665 = vpack.c.b16 %v2574, %v2573
    %v2666 = vpack.c.b16 %v2576, %v2575
    %v2667 = vpack.c.b16 %v2578, %v2577
    %v2668 = vpack.c.b16 %v2580, %v2579
    %v2669 = vpack.c.b16 %v2582, %v2581
    %v2670 = vpack.c.b16 %v2584, %v2583
    %v2671 = vpack.c.b16 %v2586, %v2585
    %v2672 = vpack.c.b16 %v2588, %v2587
    %v2673 = vpack.c.b16 %v2590, %v2589
    %v2674 = vpack.c.b16 %v2592, %v2591
    %v2675 = vpack.c.b16 %v2594, %v2593
    %v2676 = vpack.c.b16 %v2596, %v2595
    %v2677 = vpack.c.b16 %v2598, %v2597
    %v2678 = vpack.c.b16 %v2600, %v2599
    %v2679 = vpack.c.b16 %v2602, %v2601
    %v2680 = vpack.c.b16 %v2604, %v2603
    %v2681 = vpack.c.b16 %v2606, %v2605
    %v2682 = vpack.c.b16 %v2608, %v2607
    %v2683 = vpack.c.b16 %v2610, %v2609
    %v2684 = vpack.c.b16 %v2612, %v2611
    %2757 = vmatprep.subr.bf16.mxu0 0
    %2758 = vmatpush1.bf16.msra.mxu0 %v2620
    %2759 = vmatprep.subr.bf16.mxu0 0
    %2760 = vmatpush1.bf16.msra.mxu0 %v2619
    %2761 = vmatprep.subr.bf16.mxu0 0
    %2762 = vmatpush1.bf16.msra.mxu0 %v2618
    %2763 = vmatprep.subr.bf16.mxu0 0
    %2764 = vmatpush1.bf16.msra.mxu0 %v2617
    %2765 = vmatprep.subr.bf16.mxu0 0
    %2766 = vmatpush1.bf16.msra.mxu0 %v2616
    %2767 = vmatprep.subr.bf16.mxu0 0
    %2768 = vmatpush1.bf16.msra.mxu0 %v2615
    %2769 = vmatprep.subr.bf16.mxu0 0
    %2770 = vmatpush1.bf16.msra.mxu0 %v2614
    %2771 = vmatprep.subr.bf16.mxu0 0
    %2772 = vmatpush1.bf16.msra.mxu0 %v2613
    %2773 = vmatprep.subr.bf16.mxu0 0
    %2774 = vmatpush2.bf16.msra.mxu0 %v2628
    %2775 = vmatprep.subr.bf16.mxu0 0
    %2776 = vmatpush2.bf16.msra.mxu0 %v2627
    %2777 = vmatprep.subr.bf16.mxu0 0
    %2778 = vmatpush2.bf16.msra.mxu0 %v2626
    %2779 = vmatprep.subr.bf16.mxu0 0
    %2780 = vmatpush2.bf16.msra.mxu0 %v2625
    %2781 = vmatprep.subr.bf16.mxu0 0
    %2782 = vmatpush2.bf16.msra.mxu0 %v2624
    %2783 = vmatprep.subr.bf16.mxu0 0
    %2784 = vmatpush2.bf16.msra.mxu0 %v2623
    %2785 = vmatprep.subr.bf16.mxu0 0
    %2786 = vmatpush2.bf16.msra.mxu0 %v2622
    %2787 = vmatprep.subr.bf16.mxu0 0
    %2788 = vmatpush2.bf16.msra.mxu0 %v2621
    %2789 = vmatprep.mubr.bf16.mxu0 %v2200
    %2790 = vmatmul.mubr.bf16.gmra.mxu0 %v2199
    %v2791 = vpop.f32.mrf.mxu0
    %v2792 = vadd.f32 0.0, %v2791
    %v2793 = vpop.f32.mrf.mxu0
    %v2794 = vpop.f32.mrf.mxu0
    %v2795 = vadd.f32 0.0, %v2794
    %v2796 = vpop.f32.mrf.mxu0
    %2797 = vmatprep.mubr.bf16.mxu0 %v2209
    %2798 = vmatmul.mubr.bf16.gmra.mxu0 %v2208
    %v2799 = vpop.f32.mrf.mxu0
    %v2800 = vadd.f32 0.0, %v2799
    %v2801 = vpop.f32.mrf.mxu0
    %v2802 = vpop.f32.mrf.mxu0
    %v2803 = vadd.f32 0.0, %v2802
    %v2804 = vpop.f32.mrf.mxu0
    %2805 = vmatprep.mubr.bf16.mxu0 %v2218
    %2806 = vmatmul.mubr.bf16.gmra.mxu0 %v2217
    %v2807 = vpop.f32.mrf.mxu0
    %v2808 = vadd.f32 0.0, %v2807
    %v2809 = vpop.f32.mrf.mxu0
    %v2810 = vpop.f32.mrf.mxu0
    %v2811 = vadd.f32 0.0, %v2810
    %v2812 = vpop.f32.mrf.mxu0
    %2813 = vmatprep.mubr.bf16.mxu0 %v2227
    %2814 = vmatmul.mubr.bf16.gmra.mxu0 %v2226
    %v2815 = vpop.f32.mrf.mxu0
    %v2816 = vadd.f32 0.0, %v2815
    %v2817 = vpop.f32.mrf.mxu0
    %v2818 = vpop.f32.mrf.mxu0
    %v2819 = vadd.f32 0.0, %v2818
    %v2820 = vpop.f32.mrf.mxu0
    %2821 = vmatprep.mubr.bf16.mxu0 %v2236
    %2822 = vmatmul.mubr.bf16.gmra.mxu0 %v2235
    %v2823 = vpop.f32.mrf.mxu0
    %v2824 = vadd.f32 0.0, %v2823
    %v2825 = vpop.f32.mrf.mxu0
    %v2826 = vpop.f32.mrf.mxu0
    %v2827 = vadd.f32 0.0, %v2826
    %v2828 = vpop.f32.mrf.mxu0
    %2829 = vmatprep.mubr.bf16.mxu0 %v2245
    %2830 = vmatmul.mubr.bf16.gmra.mxu0 %v2244
    %v2831 = vpop.f32.mrf.mxu0
    %v2832 = vadd.f32 0.0, %v2831
    %v2833 = vpop.f32.mrf.mxu0
    %v2834 = vpop.f32.mrf.mxu0
    %v2835 = vadd.f32 0.0, %v2834
    %v2836 = vpop.f32.mrf.mxu0
    %2837 = vmatprep.mubr.bf16.mxu0 %v2254
    %2838 = vmatmul.mubr.bf16.gmra.mxu0 %v2253
    %v2839 = vpop.f32.mrf.mxu0
    %v2840 = vadd.f32 0.0, %v2839
    %v2841 = vpop.f32.mrf.mxu0
    %v2842 = vpop.f32.mrf.mxu0
    %v2843 = vpop.f32.mrf.mxu0
    %2844 = vdwg.mxu0
    %2845 = vmatprep.subr.bf16.mxu0 0
    %2846 = vmatpush1.bf16.msra.mxu0 %v2636
    %2847 = vmatprep.subr.bf16.mxu0 0
    %2848 = vmatpush1.bf16.msra.mxu0 %v2635
    %2849 = vmatprep.subr.bf16.mxu0 0
    %2850 = vmatpush1.bf16.msra.mxu0 %v2634
    %2851 = vmatprep.subr.bf16.mxu0 0
    %2852 = vmatpush1.bf16.msra.mxu0 %v2633
    %2853 = vmatprep.subr.bf16.mxu0 0
    %2854 = vmatpush1.bf16.msra.mxu0 %v2632
    %2855 = vmatprep.subr.bf16.mxu0 0
    %2856 = vmatpush1.bf16.msra.mxu0 %v2631
    %2857 = vmatprep.subr.bf16.mxu0 0
    %2858 = vmatpush1.bf16.msra.mxu0 %v2630
    %2859 = vmatprep.subr.bf16.mxu0 0
    %2860 = vmatpush1.bf16.msra.mxu0 %v2629
    %2861 = vmatprep.subr.bf16.mxu0 0
    %2862 = vmatpush2.bf16.msra.mxu0 %v2644
    %2863 = vmatprep.subr.bf16.mxu0 0
    %2864 = vmatpush2.bf16.msra.mxu0 %v2643
    %2865 = vmatprep.subr.bf16.mxu0 0
    %2866 = vmatpush2.bf16.msra.mxu0 %v2642
    %2867 = vmatprep.subr.bf16.mxu0 0
    %2868 = vmatpush2.bf16.msra.mxu0 %v2641
    %2869 = vmatprep.subr.bf16.mxu0 0
    %2870 = vmatpush2.bf16.msra.mxu0 %v2640
    %2871 = vmatprep.subr.bf16.mxu0 0
    %2872 = vmatpush2.bf16.msra.mxu0 %v2639
    %2873 = vmatprep.subr.bf16.mxu0 0
    %2874 = vmatpush2.bf16.msra.mxu0 %v2638
    %2875 = vmatprep.subr.bf16.mxu0 0
    %2876 = vmatpush2.bf16.msra.mxu0 %v2637
    %2877 = vmatprep.mubr.bf16.mxu0 %v2202
    %2878 = vmatmul.mubr.bf16.gmra.mxu0 %v2201
    %v2879 = vpop.f32.mrf.mxu0
    %v2880 = vadd.f32 %v2792, %v2879
    %v2881 = vpop.f32.mrf.mxu0
    %v2882 = vpop.f32.mrf.mxu0
    %v2883 = vadd.f32 %v2795, %v2882
    %v2884 = vpop.f32.mrf.mxu0
    %2885 = vmatprep.mubr.bf16.mxu0 %v2211
    %2886 = vmatmul.mubr.bf16.gmra.mxu0 %v2210
    %v2887 = vpop.f32.mrf.mxu0
    %v2888 = vadd.f32 %v2800, %v2887
    %v2889 = vpop.f32.mrf.mxu0
    %v2890 = vpop.f32.mrf.mxu0
    %v2891 = vadd.f32 %v2803, %v2890
    %v2892 = vpop.f32.mrf.mxu0
    %2893 = vmatprep.mubr.bf16.mxu0 %v2220
    %2894 = vmatmul.mubr.bf16.gmra.mxu0 %v2219
    %v2895 = vpop.f32.mrf.mxu0
    %v2896 = vadd.f32 %v2808, %v2895
    %v2897 = vpop.f32.mrf.mxu0
    %v2898 = vpop.f32.mrf.mxu0
    %v2899 = vadd.f32 %v2811, %v2898
    %v2900 = vpop.f32.mrf.mxu0
    %2901 = vmatprep.mubr.bf16.mxu0 %v2229
    %2902 = vmatmul.mubr.bf16.gmra.mxu0 %v2228
    %v2903 = vpop.f32.mrf.mxu0
    %v2904 = vadd.f32 %v2816, %v2903
    %v2905 = vpop.f32.mrf.mxu0
    %v2906 = vpop.f32.mrf.mxu0
    %v2907 = vadd.f32 %v2819, %v2906
    %v2908 = vpop.f32.mrf.mxu0
    %2909 = vmatprep.mubr.bf16.mxu0 %v2238
    %2910 = vmatmul.mubr.bf16.gmra.mxu0 %v2237
    %v2911 = vpop.f32.mrf.mxu0
    %v2912 = vadd.f32 %v2824, %v2911
    %v2913 = vpop.f32.mrf.mxu0
    %v2914 = vpop.f32.mrf.mxu0
    %v2915 = vadd.f32 %v2827, %v2914
    %v2916 = vpop.f32.mrf.mxu0
    %2917 = vmatprep.mubr.bf16.mxu0 %v2247
    %2918 = vmatmul.mubr.bf16.gmra.mxu0 %v2246
    %v2919 = vpop.f32.mrf.mxu0
    %v2920 = vadd.f32 %v2832, %v2919
    %v2921 = vpop.f32.mrf.mxu0
    %v2922 = vpop.f32.mrf.mxu0
    %v2923 = vadd.f32 %v2835, %v2922
    %v2924 = vpop.f32.mrf.mxu0
    %2925 = vmatprep.mubr.bf16.mxu0 %v2256
    %2926 = vmatmul.mubr.bf16.gmra.mxu0 %v2255
    %v2927 = vpop.f32.mrf.mxu0
    %v2928 = vadd.f32 %v2840, %v2927
    %v2929 = vpop.f32.mrf.mxu0
    %v2930 = vpop.f32.mrf.mxu0
    %v2931 = vpop.f32.mrf.mxu0
    %2932 = vdwg.mxu0
    %2933 = vmatprep.subr.bf16.mxu0 0
    %2934 = vmatpush1.bf16.msra.mxu0 %v2652
    %2935 = vmatprep.subr.bf16.mxu0 0
    %2936 = vmatpush1.bf16.msra.mxu0 %v2651
    %2937 = vmatprep.subr.bf16.mxu0 0
    %2938 = vmatpush1.bf16.msra.mxu0 %v2650
    %2939 = vmatprep.subr.bf16.mxu0 0
    %2940 = vmatpush1.bf16.msra.mxu0 %v2649
    %2941 = vmatprep.subr.bf16.mxu0 0
    %2942 = vmatpush1.bf16.msra.mxu0 %v2648
    %2943 = vmatprep.subr.bf16.mxu0 0
    %2944 = vmatpush1.bf16.msra.mxu0 %v2647
    %2945 = vmatprep.subr.bf16.mxu0 0
    %2946 = vmatpush1.bf16.msra.mxu0 %v2646
    %2947 = vmatprep.subr.bf16.mxu0 0
    %2948 = vmatpush1.bf16.msra.mxu0 %v2645
    %2949 = vmatprep.subr.bf16.mxu0 0
    %2950 = vmatpush2.bf16.msra.mxu0 %v2660
    %2951 = vmatprep.subr.bf16.mxu0 0
    %2952 = vmatpush2.bf16.msra.mxu0 %v2659
    %2953 = vmatprep.subr.bf16.mxu0 0
    %2954 = vmatpush2.bf16.msra.mxu0 %v2658
    %2955 = vmatprep.subr.bf16.mxu0 0
    %2956 = vmatpush2.bf16.msra.mxu0 %v2657
    %2957 = vmatprep.subr.bf16.mxu0 0
    %2958 = vmatpush2.bf16.msra.mxu0 %v2656
    %2959 = vmatprep.subr.bf16.mxu0 0
    %2960 = vmatpush2.bf16.msra.mxu0 %v2655
    %2961 = vmatprep.subr.bf16.mxu0 0
    %2962 = vmatpush2.bf16.msra.mxu0 %v2654
    %2963 = vmatprep.subr.bf16.mxu0 0
    %2964 = vmatpush2.bf16.msra.mxu0 %v2653
    %2965 = vmatprep.mubr.bf16.mxu0 %v2204
    %2966 = vmatmul.mubr.bf16.gmra.mxu0 %v2203
    %v2967 = vpop.f32.mrf.mxu0
    %v2968 = vadd.f32 %v2880, %v2967
    %v2969 = vpop.f32.mrf.mxu0
    %v2970 = vpop.f32.mrf.mxu0
    %v2971 = vadd.f32 %v2883, %v2970
    %v2972 = vpop.f32.mrf.mxu0
    %2973 = vmatprep.mubr.bf16.mxu0 %v2213
    %2974 = vmatmul.mubr.bf16.gmra.mxu0 %v2212
    %v2975 = vpop.f32.mrf.mxu0
    %v2976 = vadd.f32 %v2888, %v2975
    %v2977 = vpop.f32.mrf.mxu0
    %v2978 = vpop.f32.mrf.mxu0
    %v2979 = vadd.f32 %v2891, %v2978
    %v2980 = vpop.f32.mrf.mxu0
    %2981 = vmatprep.mubr.bf16.mxu0 %v2222
    %2982 = vmatmul.mubr.bf16.gmra.mxu0 %v2221
    %v2983 = vpop.f32.mrf.mxu0
    %v2984 = vadd.f32 %v2896, %v2983
    %v2985 = vpop.f32.mrf.mxu0
    %v2986 = vpop.f32.mrf.mxu0
    %v2987 = vadd.f32 %v2899, %v2986
    %v2988 = vpop.f32.mrf.mxu0
    %2989 = vmatprep.mubr.bf16.mxu0 %v2231
    %2990 = vmatmul.mubr.bf16.gmra.mxu0 %v2230
    %v2991 = vpop.f32.mrf.mxu0
    %v2992 = vadd.f32 %v2904, %v2991
    %v2993 = vpop.f32.mrf.mxu0
    %v2994 = vpop.f32.mrf.mxu0
    %v2995 = vadd.f32 %v2907, %v2994
    %v2996 = vpop.f32.mrf.mxu0
    %2997 = vmatprep.mubr.bf16.mxu0 %v2240
    %2998 = vmatmul.mubr.bf16.gmra.mxu0 %v2239
    %v2999 = vpop.f32.mrf.mxu0
    %v3000 = vadd.f32 %v2912, %v2999
    %v3001 = vpop.f32.mrf.mxu0
    %v3002 = vpop.f32.mrf.mxu0
    %v3003 = vadd.f32 %v2915, %v3002
    %v3004 = vpop.f32.mrf.mxu0
    %3005 = vmatprep.mubr.bf16.mxu0 %v2249
    %3006 = vmatmul.mubr.bf16.gmra.mxu0 %v2248
    %v3007 = vpop.f32.mrf.mxu0
    %v3008 = vadd.f32 %v2920, %v3007
    %v3009 = vpop.f32.mrf.mxu0
    %v3010 = vpop.f32.mrf.mxu0
    %v3011 = vadd.f32 %v2923, %v3010
    %v3012 = vpop.f32.mrf.mxu0
    %3013 = vmatprep.mubr.bf16.mxu0 %v2258
    %3014 = vmatmul.mubr.bf16.gmra.mxu0 %v2257
    %v3015 = vpop.f32.mrf.mxu0
    %v3016 = vadd.f32 %v2928, %v3015
    %v3017 = vpop.f32.mrf.mxu0
    %v3018 = vpop.f32.mrf.mxu0
    %v3019 = vpop.f32.mrf.mxu0
    %3020 = vdwg.mxu0
    %3021 = vmatprep.subr.bf16.mxu0 0
    %3022 = vmatpush1.bf16.msra.mxu0 %v2668
    %3023 = vmatprep.subr.bf16.mxu0 0
    %3024 = vmatpush1.bf16.msra.mxu0 %v2667
    %3025 = vmatprep.subr.bf16.mxu0 0
    %3026 = vmatpush1.bf16.msra.mxu0 %v2666
    %3027 = vmatprep.subr.bf16.mxu0 0
    %3028 = vmatpush1.bf16.msra.mxu0 %v2665
    %3029 = vmatprep.subr.bf16.mxu0 0
    %3030 = vmatpush1.bf16.msra.mxu0 %v2664
    %3031 = vmatprep.subr.bf16.mxu0 0
    %3032 = vmatpush1.bf16.msra.mxu0 %v2663
    %3033 = vmatprep.subr.bf16.mxu0 0
    %3034 = vmatpush1.bf16.msra.mxu0 %v2662
    %3035 = vmatprep.subr.bf16.mxu0 0
    %3036 = vmatpush1.bf16.msra.mxu0 %v2661
    %3037 = vmatprep.subr.bf16.mxu0 0
    %3038 = vmatpush2.bf16.msra.mxu0 %v2676
    %3039 = vmatprep.subr.bf16.mxu0 0
    %3040 = vmatpush2.bf16.msra.mxu0 %v2675
    %3041 = vmatprep.subr.bf16.mxu0 0
    %3042 = vmatpush2.bf16.msra.mxu0 %v2674
    %3043 = vmatprep.subr.bf16.mxu0 0
    %3044 = vmatpush2.bf16.msra.mxu0 %v2673
    %3045 = vmatprep.subr.bf16.mxu0 0
    %3046 = vmatpush2.bf16.msra.mxu0 %v2672
    %3047 = vmatprep.subr.bf16.mxu0 0
    %3048 = vmatpush2.bf16.msra.mxu0 %v2671
    %3049 = vmatprep.subr.bf16.mxu0 0
    %3050 = vmatpush2.bf16.msra.mxu0 %v2670
    %3051 = vmatprep.subr.bf16.mxu0 0
    %3052 = vmatpush2.bf16.msra.mxu0 %v2669
    %3053 = vmatprep.mubr.bf16.mxu0 %v2206
    %3054 = vmatmul.mubr.bf16.gmra.mxu0 %v2205
    %v3055 = vpop.f32.mrf.mxu0
    %v3056 = vadd.f32 %v2968, %v3055
    %v3057 = vpop.f32.mrf.mxu0
    %v3058 = vpop.f32.mrf.mxu0
    %v3059 = vadd.f32 %v2971, %v3058
    %v3060 = vpop.f32.mrf.mxu0
    %3061 = vmatprep.mubr.bf16.mxu0 %v2215
    %3062 = vmatmul.mubr.bf16.gmra.mxu0 %v2214
    %v3063 = vpop.f32.mrf.mxu0
    %v3064 = vadd.f32 %v2976, %v3063
    %v3065 = vpop.f32.mrf.mxu0
    %v3066 = vpop.f32.mrf.mxu0
    %v3067 = vadd.f32 %v2979, %v3066
    %v3068 = vpop.f32.mrf.mxu0
    %3069 = vmatprep.mubr.bf16.mxu0 %v2224
    %3070 = vmatmul.mubr.bf16.gmra.mxu0 %v2223
    %v3071 = vpop.f32.mrf.mxu0
    %v3072 = vadd.f32 %v2984, %v3071
    %v3073 = vpop.f32.mrf.mxu0
    %v3074 = vpop.f32.mrf.mxu0
    %v3075 = vadd.f32 %v2987, %v3074
    %v3076 = vpop.f32.mrf.mxu0
    %3077 = vmatprep.mubr.bf16.mxu0 %v2233
    %3078 = vmatmul.mubr.bf16.gmra.mxu0 %v2232
    %v3079 = vpop.f32.mrf.mxu0
    %v3080 = vadd.f32 %v2992, %v3079
    %v3081 = vpop.f32.mrf.mxu0
    %v3082 = vpop.f32.mrf.mxu0
    %v3083 = vadd.f32 %v2995, %v3082
    %v3084 = vpop.f32.mrf.mxu0
    %3085 = vmatprep.mubr.bf16.mxu0 %v2242
    %3086 = vmatmul.mubr.bf16.gmra.mxu0 %v2241
    %v3087 = vpop.f32.mrf.mxu0
    %v3088 = vadd.f32 %v3000, %v3087
    %v3089 = vpop.f32.mrf.mxu0
    %v3090 = vpop.f32.mrf.mxu0
    %v3091 = vadd.f32 %v3003, %v3090
    %v3092 = vpop.f32.mrf.mxu0
    %3093 = vmatprep.mubr.bf16.mxu0 %v2251
    %3094 = vmatmul.mubr.bf16.gmra.mxu0 %v2250
    %v3095 = vpop.f32.mrf.mxu0
    %v3096 = vadd.f32 %v3008, %v3095
    %v3097 = vpop.f32.mrf.mxu0
    %v3098 = vpop.f32.mrf.mxu0
    %v3099 = vadd.f32 %v3011, %v3098
    %v3100 = vpop.f32.mrf.mxu0
    %3101 = vmatprep.mubr.bf16.mxu0 %v2260
    %3102 = vmatmul.mubr.bf16.gmra.mxu0 %v2259
    %v3103 = vpop.f32.mrf.mxu0
    %v3104 = vadd.f32 %v3016, %v3103
    %v3105 = vpop.f32.mrf.mxu0
    %v3106 = vpop.f32.mrf.mxu0
    %v3107 = vpop.f32.mrf.mxu0
    %3108 = vdwg.mxu0
    %3109 = vmatprep.subr.bf16.mxu0 0
    %3110 = vmatpush1.bf16.msra.mxu0 %v2684
    %3111 = vmatprep.subr.bf16.mxu0 0
    %3112 = vmatpush1.bf16.msra.mxu0 %v2683
    %3113 = vmatprep.subr.bf16.mxu0 0
    %3114 = vmatpush1.bf16.msra.mxu0 %v2682
    %3115 = vmatprep.subr.bf16.mxu0 0
    %3116 = vmatpush1.bf16.msra.mxu0 %v2681
    %3117 = vmatprep.subr.bf16.mxu0 0
    %3118 = vmatpush1.bf16.msra.mxu0 %v2680
    %3119 = vmatprep.subr.bf16.mxu0 0
    %3120 = vmatpush1.bf16.msra.mxu0 %v2679
    %3121 = vmatprep.subr.bf16.mxu0 0
    %3122 = vmatpush1.bf16.msra.mxu0 %v2678
    %3123 = vmatprep.subr.bf16.mxu0 0
    %3124 = vmatpush1.bf16.msra.mxu0 %v2677
    %3125 = vmatprep.subr.bf16.mxu0 0
    %3126 = vmatpush2.bf16.msra.mxu0 0
    %3127 = vmatprep.subr.bf16.mxu0 0
    %3128 = vmatpush2.bf16.msra.mxu0 0
    %3129 = vmatprep.subr.bf16.mxu0 0
    %3130 = vmatpush2.bf16.msra.mxu0 0
    %3131 = vmatprep.subr.bf16.mxu0 0
    %3132 = vmatpush2.bf16.msra.mxu0 0
    %3133 = vmatprep.subr.bf16.mxu0 0
    %3134 = vmatpush2.bf16.msra.mxu0 0
    %3135 = vmatprep.subr.bf16.mxu0 0
    %3136 = vmatpush2.bf16.msra.mxu0 0
    %3137 = vmatprep.subr.bf16.mxu0 0
    %3138 = vmatpush2.bf16.msra.mxu0 0
    %3139 = vmatprep.subr.bf16.mxu0 0
    %3140 = vmatpush2.bf16.msra.mxu0 0
    %3141 = vmatprep.mubr.bf16.mxu0 0
    %3142 = vmatmul.mubr.bf16.gmra.mxu0 %v2207
    %v3143 = vpop.f32.mrf.mxu0
    %v3144 = vadd.f32 %v3056, %v3143
    %v3145 = vpop.f32.mrf.mxu0
    %v3146 = vpop.f32.mrf.mxu0
    %v3147 = vadd.f32 %v3059, %v3146
    %v3148 = vpop.f32.mrf.mxu0
    %3149 = vmatprep.mubr.bf16.mxu0 0
    %3150 = vmatmul.mubr.bf16.gmra.mxu0 %v2216
    %v3151 = vpop.f32.mrf.mxu0
    %v3152 = vadd.f32 %v3064, %v3151
    %v3153 = vpop.f32.mrf.mxu0
    %v3154 = vpop.f32.mrf.mxu0
    %v3155 = vadd.f32 %v3067, %v3154
    %v3156 = vpop.f32.mrf.mxu0
    %3157 = vmatprep.mubr.bf16.mxu0 0
    %3158 = vmatmul.mubr.bf16.gmra.mxu0 %v2225
    %v3159 = vpop.f32.mrf.mxu0
    %v3160 = vadd.f32 %v3072, %v3159
    %v3161 = vpop.f32.mrf.mxu0
    %v3162 = vpop.f32.mrf.mxu0
    %v3163 = vadd.f32 %v3075, %v3162
    %v3164 = vpop.f32.mrf.mxu0
    %3165 = vmatprep.mubr.bf16.mxu0 0
    %3166 = vmatmul.mubr.bf16.gmra.mxu0 %v2234
    %v3167 = vpop.f32.mrf.mxu0
    %v3168 = vadd.f32 %v3080, %v3167
    %v3169 = vpop.f32.mrf.mxu0
    %v3170 = vpop.f32.mrf.mxu0
    %v3171 = vadd.f32 %v3083, %v3170
    %v3172 = vpop.f32.mrf.mxu0
    %3173 = vmatprep.mubr.bf16.mxu0 0
    %3174 = vmatmul.mubr.bf16.gmra.mxu0 %v2243
    %v3175 = vpop.f32.mrf.mxu0
    %v3176 = vadd.f32 %v3088, %v3175
    %v3177 = vpop.f32.mrf.mxu0
    %v3178 = vpop.f32.mrf.mxu0
    %v3179 = vadd.f32 %v3091, %v3178
    %v3180 = vpop.f32.mrf.mxu0
    %3181 = vmatprep.mubr.bf16.mxu0 0
    %3182 = vmatmul.mubr.bf16.gmra.mxu0 %v2252
    %v3183 = vpop.f32.mrf.mxu0
    %v3184 = vadd.f32 %v3096, %v3183
    %v3185 = vpop.f32.mrf.mxu0
    %v3186 = vpop.f32.mrf.mxu0
    %v3187 = vadd.f32 %v3099, %v3186
    %v3188 = vpop.f32.mrf.mxu0
    %3189 = vmatprep.mubr.bf16.mxu0 0
    %3190 = vmatmul.mubr.bf16.gmra.mxu0 %v2261
    %v3191 = vpop.f32.mrf.mxu0
    %v3192 = vadd.f32 %v3104, %v3191
    %v3193 = vpop.f32.mrf.mxu0
    %v3194 = vpop.f32.mrf.mxu0
    %v3195 = vpop.f32.mrf.mxu0
    %3196 = vdwg.mxu0
    %v3197 = vpack.c.bf16 %v3147, %v3144
    %v3198 = vpack.c.bf16 %v3155, %v3152
    %v3199 = vpack.c.bf16 %v3163, %v3160
    %v3200 = vpack.c.bf16 %v3171, %v3168
    %v3201 = vpack.c.bf16 %v3179, %v3176
    %v3202 = vpack.c.bf16 %v3187, %v3184
    %v3203 = vpack.c.bf16 %v3192, %v3192
    %v3211 = vunpack.c.l.b16 %v3197
    %v3212 = vunpack.c.h.b16 %v3197
    %v3213 = vunpack.c.l.b16 %v3198
    %v3214 = vunpack.c.h.b16 %v3198
    %v3215 = vunpack.c.l.b16 %v3199
    %v3216 = vunpack.c.h.b16 %v3199
    %v3217 = vunpack.c.l.b16 %v3200
    %v3218 = vunpack.c.h.b16 %v3200
    %v3219 = vunpack.c.l.b16 %v3201
    %v3220 = vunpack.c.h.b16 %v3201
    %v3221 = vunpack.c.l.b16 %v3202
    %v3222 = vunpack.c.h.b16 %v3202
    %v3223 = vunpack.c.l.b16 %v3203
    %v3224 = vpack.c.b16 %v3211, %v3211
    %v3225 = vpack.c.b16 %v3212, %v3212
    %v3226 = vpack.c.b16 %v3213, %v3213
    %v3227 = vpack.c.b16 %v3214, %v3214
    %v3228 = vpack.c.b16 %v3215, %v3215
    %v3229 = vpack.c.b16 %v3216, %v3216
    %v3230 = vpack.c.b16 %v3217, %v3217
    %v3231 = vpack.c.b16 %v3218, %v3218
    %v3232 = vpack.c.b16 %v3219, %v3219
    %v3233 = vpack.c.b16 %v3220, %v3220
    %v3234 = vpack.c.b16 %v3221, %v3221
    %v3235 = vpack.c.b16 %v3222, %v3222
    %v3236 = vpack.c.b16 %v3223, %v3223
    %3250 = vst [vmem:[#allocation7] sm:$0xf] %v3224
    %3251 = vst [vmem:[#allocation7 + $0x4] sm:$0xf] %v3225
    %3252 = vst [vmem:[#allocation7 + $0x8] sm:$0xf] %v3226
    %3253 = vst [vmem:[#allocation7 + $0xc] sm:$0xf] %v3227
    %3254 = vst [vmem:[#allocation7 + $0x10] sm:$0xf] %v3228
    %3255 = vst [vmem:[#allocation7 + $0x14] sm:$0xf] %v3229
    %3256 = vst [vmem:[#allocation7 + $0x18] sm:$0xf] %v3230
    %3257 = vst [vmem:[#allocation7 + $0x1c] sm:$0xf] %v3231
    %3258 = vst [vmem:[#allocation7 + $0x20] sm:$0xf] %v3232
    %3259 = vst [vmem:[#allocation7 + $0x24] sm:$0xf] %v3233
    %3260 = vst [vmem:[#allocation7 + $0x28] sm:$0xf] %v3234
    %3261 = vst [vmem:[#allocation7 + $0x2c] sm:$0xf] %v3235
    %3262 = vst [vmem:[#allocation7 + $0x30] sm:$0x3] %v3236
    // Predicated region
    $region26: #{tpu_custom_call.1} parent=1 // pred_check
      _
    $region27: #{tpu_custom_call.1} parent=1 // pred_check_branch
      %3264 = sbr.rel (0) target = $region29
    $region28: #{tpu_custom_call.1} parent=1 // pred_region
      %s3266 = ssub.s32 832, 832
      %3267 = vsyncadd [#allocation6], %s3266
      %s3268 = sshll.u32 [#allocation7], 4
      %s3269 = int_to_ptr.vmem [resolvable:$true] %s3268
      %3274 = dma.vmem_to_hbm [thread:$0]  %s3269, 832, %s5, [#allocation6], 64, 64, 4
    $region29: #{tpu_custom_call.1} parent=1 // pred_fallthru
      _
    // Predicated region
    $region30: #{tpu_custom_call.1} parent=1 // pred_check
      _
    $region31: #{tpu_custom_call.1} parent=1 // pred_check_branch
      %3276 = sbr.rel (0) target = $region33
    $region32: #{tpu_custom_call.1} parent=1 // pred_region
      %3277 = dma.done [#allocation6], 832
    $region33: #{tpu_custom_call.1} parent=1 // pred_fallthru
      _
    %3278 = vsyncpa [#allocation5], 1
    %3279 = vsyncpa [#allocation6], 1

</llo_original>
